<compile_context>
chip_gen: v7x
topology: tpu7x:2x2x1
jax: 0.10.0
libtpu: 0.0.40
codegen_flags: <defaults>
</compile_context>

<pallas_src>
import functools

import jax
import jax.numpy as jnp
from jax.experimental import pallas as pl
from jax.experimental.pallas import tpu as pltpu

# --- small, module-consistent demo shapes (original: n_embd=384, block_size=256) ---
B = 2            # batch
T = 16           # sequence length (<= block_size)
N_EMBD = 128     # embedding dim; multiple of 128 -> lane-dense stores
N_HEADS = 4
HEAD_SIZE = N_EMBD // N_HEADS
HIDDEN = 4 * N_EMBD
EPS = 1e-5       # nn.LayerNorm default
NEG_INF = -1e30  # finite causal-mask fill (diagonal never masked -> no NaN rows)


def _layernorm(x, gamma, beta):
    mu = jnp.mean(x, axis=-1, keepdims=True)
    var = jnp.mean((x - mu) ** 2, axis=-1, keepdims=True)
    return (x - mu) * jax.lax.rsqrt(var + EPS) * gamma + beta


def transformer_block_kernel(
    x_ref,                 # (R, C)   f32, R = batch_per_step * T rows
    wqkv_ref,              # (C, 3C)  bf16  [ q*scale | k | v ], heads along lanes
    wp_ref,                # (C, C)   bf16
    w1_ref,                # (C, 4C)  bf16
    w2_ref,                # (4C, C)  bf16
    vecs_ref,              # (6, C)   f32   [ g1, be1, g2, be2, bp, b2 ]
    b1_ref,                # (1, 4C)  f32
    o_ref,                 # (R, C)   f32
    *, n_heads, seq_len,
):
    r, c = x_ref.shape
    h = n_heads
    hs = c // h
    t = seq_len
    bb = r // t                          # batch elements folded into this grid step

    vecs = vecs_ref[...]
    g1, be1 = vecs[0:1, :], vecs[1:2, :]
    g2, be2 = vecs[2:3, :], vecs[3:4, :]
    bp, b2 = vecs[4:5, :], vecs[5:6, :]

    x = x_ref[...].astype(jnp.float32)                         # (R, C)

    # --- LayerNorm 1 (f32 stats) ---
    xn = _layernorm(x, g1, be1)                                # (R, C)
    xn_b = xn.astype(jnp.bfloat16)

    # --- fused QKV projection: ONE lane-dense MXU matmul, scale pre-folded into q ---
    qkv = jnp.dot(xn_b, wqkv_ref[...],
                  preferred_element_type=jnp.float32)          # (R, 3C) f32

    # --- causal mask, computed once and shared by every head / batch row ---
    row = jax.lax.broadcasted_iota(jnp.int32, (t, t), 0)
    col = jax.lax.broadcasted_iota(jnp.int32, (t, t), 1)
    causal = col <= row                                        # (T, T)

    # --- per-(batch, head) attention on row/lane slices of the fused qkv tile ---
    # Unrolled at trace time (bb*h small); all ops are 2D.  hs=32-wide MXU
    # contractions are inherent to the head structure at this head size.
    attn_rows = []
    for b in range(bb):
        rs = slice(b * t, (b + 1) * t)
        head_outs = []
        for i in range(h):
            q_i = qkv[rs, 0 * c + i * hs: 0 * c + (i + 1) * hs].astype(jnp.bfloat16)
            k_i = qkv[rs, 1 * c + i * hs: 1 * c + (i + 1) * hs].astype(jnp.bfloat16)
            v_i = qkv[rs, 2 * c + i * hs: 2 * c + (i + 1) * hs].astype(jnp.bfloat16)

            s = jnp.einsum("qd,kd->qk", q_i, k_i,
                           preferred_element_type=jnp.float32)  # (T, T) f32
            s = jnp.where(causal, s, NEG_INF)
            m = jnp.max(s, axis=-1, keepdims=True)
            e = jnp.exp(s - m)
            denom = jnp.sum(e, axis=-1, keepdims=True)
            p = e * pl.reciprocal(denom, approx=True)            # divide on the EUP

            head_outs.append(jnp.dot(p.astype(jnp.bfloat16), v_i,
                                     preferred_element_type=jnp.float32))  # (T, hs)
        # one small lane relayout: (H x (T,32)) -> lane-dense (T, C)
        attn_rows.append(jnp.concatenate(head_outs, axis=-1))
    attn_cat = attn_rows[0] if bb == 1 else jnp.concatenate(attn_rows, axis=0)  # (R, C)

    # --- single lane-dense output projection (K = C = 128) ---
    attn = jnp.dot(attn_cat.astype(jnp.bfloat16), wp_ref[...],
                   preferred_element_type=jnp.float32) + bp      # (R, C)

    x1 = xn + attn          # residual added to ln1(x), exactly as the PyTorch forward

    # --- LayerNorm 2 + FeedForward ---
    x2n = _layernorm(x1, g2, be2)
    hdn = jnp.dot(x2n.astype(jnp.bfloat16), w1_ref[...],
                  preferred_element_type=jnp.float32) + b1_ref[...]
    hdn = jnp.maximum(hdn, 0.0)                                  # ReLU
    ff = jnp.dot(hdn.astype(jnp.bfloat16), w2_ref[...],
                 preferred_element_type=jnp.float32) + b2

    o_ref[...] = (x2n + ff).astype(o_ref.dtype)


def pack_params(p):
    """Repack PyTorch-layout f32 params into the kernel layout (done once, offline)."""
    scale = jnp.float32(N_EMBD) ** -0.5          # PyTorch Head scales by n_embd**-0.5
    # Fused QKV weight, attention scale folded into the q columns before the bf16 cast.
    wqkv = jnp.concatenate([p["wq"] * scale, p["wk"], p["wv"]], axis=1)     # (C, 3C)
    # Small per-channel vectors packed into a single (6, C) f32 block.
    vecs = jnp.concatenate([p["g1"], p["be1"], p["g2"], p["be2"],
                            p["bp"], p["b2"]], axis=0)                      # (6, C)
    return dict(
        wqkv=wqkv.astype(jnp.bfloat16),
        wp=p["wp"].astype(jnp.bfloat16),
        w1=p["w1"].astype(jnp.bfloat16),
        w2=p["w2"].astype(jnp.bfloat16),
        vecs=vecs.astype(jnp.float32),
        b1=p["b1"].astype(jnp.float32),
    )


def transformer_block(x, packed, *, batch_per_step=None):
    """x: (B, T, C) float32; packed = pack_params(params).

    batch_per_step=None (default) folds the whole batch into one grid step
    (B*T rows: best on single-TensorCore v5e/v6e -- fewer fixed per-step costs,
    more matmul rows).  batch_per_step=1 keeps a parallel grid=(B,) so both
    v7x TensorCores get a batch element each.
    """
    Bsz, Tlen, C = x.shape
    if batch_per_step is None:
        batch_per_step = Bsz
    assert Bsz % batch_per_step == 0
    rows = batch_per_step * Tlen

    # Fold batch into rows outside the kernel (free XLA reshape) so the kernel
    # body is purely 2D and lane-dense.
    x2d = x.reshape(Bsz * Tlen, C)

    weight_args = (packed["wqkv"], packed["wp"], packed["w1"], packed["w2"],
                   packed["vecs"], packed["b1"])

    def full_spec(a):
        # Grid-invariant weights: same block index every step, so Pallas stages them
        # once.  At production dims on v7x (64 MiB VMEM), consider
        # pipeline_mode=pl.Buffered(1) + re-derived vmem_limit_bytes.
        nd = a.ndim
        return pl.BlockSpec(a.shape, lambda g, _nd=nd: (0,) * _nd)

    in_specs = [pl.BlockSpec((rows, C), lambda g: (g, 0))]
    in_specs += [full_spec(a) for a in weight_args]

    kernel = functools.partial(transformer_block_kernel,
                               n_heads=N_HEADS, seq_len=Tlen)

    out2d = pl.pallas_call(
        kernel,
        out_shape=jax.ShapeDtypeStruct((Bsz * Tlen, C), jnp.float32),
        grid_spec=pltpu.PrefetchScalarGridSpec(
            num_scalar_prefetch=0,
            grid=(Bsz // batch_per_step,),
            in_specs=in_specs,
            out_specs=pl.BlockSpec((rows, C), lambda g: (g, 0)),
        ),
        compiler_params=pltpu.CompilerParams(
            dimension_semantics=("parallel",),
            vmem_limit_bytes=32 * 1024 * 1024,
        ),
    )(x2d, *weight_args)
    return out2d.reshape(Bsz, Tlen, C)


def reference(x, p):
    """Pure-JAX reference of the PyTorch forward (eval mode), per-head like the
    original module, with matching bf16 matmul operands for tight comparison."""
    def ln(y, g, b):
        mu = jnp.mean(y, -1, keepdims=True)
        var = jnp.mean((y - mu) ** 2, -1, keepdims=True)
        return (y - mu) * jax.lax.rsqrt(var + EPS) * g + b

    def bmm(a, w):
        return jnp.einsum("btc,cd->btd", a.astype(jnp.bfloat16),
                          w.astype(jnp.bfloat16),
                          preferred_element_type=jnp.float32)

    Bsz, Tlen, C = x.shape
    scale = jnp.float32(C) ** -0.5
    mask = jnp.tril(jnp.ones((Tlen, Tlen), bool))

    xn = ln(x, p["g1"], p["be1"])
    heads = []
    for i in range(N_HEADS):
        sl = slice(i * HEAD_SIZE, (i + 1) * HEAD_SIZE)
        q = bmm(xn, p["wq"][:, sl]) * scale
        k = bmm(xn, p["wk"][:, sl])
        v = bmm(xn, p["wv"][:, sl])
        wei = jnp.einsum("bqd,bkd->bqk", q.astype(jnp.bfloat16),
                         k.astype(jnp.bfloat16),
                         preferred_element_type=jnp.float32)
        wei = jnp.where(mask, wei, NEG_INF)
        wei = jax.nn.softmax(wei, axis=-1)
        heads.append(jnp.einsum("bqk,bkd->bqd", wei.astype(jnp.bfloat16),
                                v.astype(jnp.bfloat16),
                                preferred_element_type=jnp.float32))
    attn = bmm(jnp.concatenate(heads, axis=-1), p["wp"]) + p["bp"]
    x1 = xn + attn
    x2n = ln(x1, p["g2"], p["be2"])
    ff = bmm(jnp.maximum(bmm(x2n, p["w1"]) + p["b1"], 0.0), p["w2"]) + p["b2"]
    return x2n + ff


if __name__ == "__main__":
    key = jax.random.PRNGKey(0)
    keys = jax.random.split(key, 16)

    def init(k, shape, scale=0.05):
        return (scale * jax.random.normal(k, shape)).astype(jnp.float32)

    params = {
        # attention projections, stored as (in, out); per-head weights concatenated
        "wq": init(keys[0], (N_EMBD, N_EMBD)),
        "wk": init(keys[1], (N_EMBD, N_EMBD)),
        "wv": init(keys[2], (N_EMBD, N_EMBD)),
        "wp": init(keys[3], (N_EMBD, N_EMBD)),
        "bp": init(keys[4], (1, N_EMBD)),
        # feed-forward
        "w1": init(keys[5], (N_EMBD, HIDDEN)),
        "b1": init(keys[6], (1, HIDDEN)),
        "w2": init(keys[7], (HIDDEN, N_EMBD)),
        "b2": init(keys[8], (1, N_EMBD)),
        # layernorm affine params
        "g1": 1.0 + init(keys[9], (1, N_EMBD)),
        "be1": init(keys[10], (1, N_EMBD)),
        "g2": 1.0 + init(keys[11], (1, N_EMBD)),
        "be2": init(keys[12], (1, N_EMBD)),
    }

    x = jax.random.normal(keys[13], (B, T, N_EMBD), dtype=jnp.float32)
    packed = pack_params(params)
    ref = reference(x, params)

    # Default: whole batch folded into rows, single grid step (v5e/v6e layout).
    out_fold = jax.block_until_ready(transformer_block(x, packed))
    assert out_fold.shape == (B, T, N_EMBD)
    err_fold = jnp.max(jnp.abs(out_fold - ref))
    assert jnp.allclose(out_fold, ref, atol=1e-2, rtol=1e-2), \
        f"folded-batch mismatch vs reference (max abs err {err_fold})"

    # Parallel grid over batch (v7x dual-TensorCore layout).
    out_par = jax.block_until_ready(transformer_block(x, packed, batch_per_step=1))
    err_par = jnp.max(jnp.abs(out_par - ref))
    assert jnp.allclose(out_par, ref, atol=1e-2, rtol=1e-2), \
        f"parallel-grid mismatch vs reference (max abs err {err_par})"

    print("KERNEL_OK")
</pallas_src>

<mosaic_0001>
module attributes {stable_mosaic.version = 11 : i64} {
  func.func @transformer_block_kernel(%arg0: i32, %arg1: memref<32x128xf32, #tpu.memory_space<vmem>>, %arg2: memref<128x384xbf16, #tpu.memory_space<vmem>>, %arg3: memref<128x128xbf16, #tpu.memory_space<vmem>>, %arg4: memref<128x512xbf16, #tpu.memory_space<vmem>>, %arg5: memref<512x128xbf16, #tpu.memory_space<vmem>>, %arg6: memref<6x128xf32, #tpu.memory_space<vmem>>, %arg7: memref<1x512xf32, #tpu.memory_space<vmem>>, %arg8: memref<32x128xf32, #tpu.memory_space<vmem>>) attributes {dimension_semantics = [#tpu.dimension_semantics<parallel>], iteration_bounds = array<i64: 1>, scalar_prefetch = 0 : i64, scratch_operands = 0 : i64, tpu.core_type = #tpu.core_type<tc>, window_params = [{transform_indices = @transform_0, window_bounds = array<i64: 32, 128>}, {pipeline_mode = #tpu.pipeline_mode<synchronous>, transform_indices = @transform_1, window_bounds = array<i64: 128, 384>}, {pipeline_mode = #tpu.pipeline_mode<synchronous>, transform_indices = @transform_2, window_bounds = array<i64: 128, 128>}, {pipeline_mode = #tpu.pipeline_mode<synchronous>, transform_indices = @transform_3, window_bounds = array<i64: 128, 512>}, {pipeline_mode = #tpu.pipeline_mode<synchronous>, transform_indices = @transform_4, window_bounds = array<i64: 512, 128>}, {pipeline_mode = #tpu.pipeline_mode<synchronous>, transform_indices = @transform_5, window_bounds = array<i64: 6, 128>}, {pipeline_mode = #tpu.pipeline_mode<synchronous>, transform_indices = @transform_6, window_bounds = array<i64: 1, 512>}, {transform_indices = @transform_7, window_bounds = array<i64: 32, 128>}]} {
    %c0 = arith.constant 0 : index
    %c0_0 = arith.constant 0 : index
    %0 = vector.load %arg6[%c0, %c0_0] : memref<6x128xf32, #tpu.memory_space<vmem>>, vector<6x128xf32>
    %1 = vector.extract_strided_slice %0 {offsets = [0, 0], sizes = [1, 128], strides = [1, 1]} : vector<6x128xf32> to vector<1x128xf32>
    %2 = vector.extract_strided_slice %0 {offsets = [1, 0], sizes = [1, 128], strides = [1, 1]} : vector<6x128xf32> to vector<1x128xf32>
    %3 = vector.extract_strided_slice %0 {offsets = [2, 0], sizes = [1, 128], strides = [1, 1]} : vector<6x128xf32> to vector<1x128xf32>
    %4 = vector.extract_strided_slice %0 {offsets = [3, 0], sizes = [1, 128], strides = [1, 1]} : vector<6x128xf32> to vector<1x128xf32>
    %5 = vector.extract_strided_slice %0 {offsets = [4, 0], sizes = [1, 128], strides = [1, 1]} : vector<6x128xf32> to vector<1x128xf32>
    %6 = vector.extract_strided_slice %0 {offsets = [5, 0], sizes = [1, 128], strides = [1, 1]} : vector<6x128xf32> to vector<1x128xf32>
    %c0_1 = arith.constant 0 : index
    %c0_2 = arith.constant 0 : index
    %7 = vector.load %arg1[%c0_1, %c0_2] : memref<32x128xf32, #tpu.memory_space<vmem>>, vector<32x128xf32>
    %cst = arith.constant dense<0.000000e+00> : vector<32xf32>
    %8 = vector.multi_reduction <add>, %7, %cst [1] : vector<32x128xf32> to vector<32xf32>
    %9 = vector.shape_cast %8 : vector<32xf32> to vector<32x1xf32>
    %cst_3 = arith.constant 1.280000e+02 : f32
    %10 = vector.broadcast %cst_3 : f32 to vector<32x1xf32>
    %11 = arith.divf %9, %10 : vector<32x1xf32>
    %12 = vector.broadcast %11 : vector<32x1xf32> to vector<32x128xf32>
    %13 = arith.subf %7, %12 : vector<32x128xf32>
    %14 = arith.mulf %13, %13 : vector<32x128xf32>
    %cst_4 = arith.constant dense<0.000000e+00> : vector<32xf32>
    %15 = vector.multi_reduction <add>, %14, %cst_4 [1] : vector<32x128xf32> to vector<32xf32>
    %16 = vector.shape_cast %15 : vector<32xf32> to vector<32x1xf32>
    %cst_5 = arith.constant 1.280000e+02 : f32
    %17 = vector.broadcast %cst_5 : f32 to vector<32x1xf32>
    %18 = arith.divf %16, %17 : vector<32x1xf32>
    %19 = vector.broadcast %11 : vector<32x1xf32> to vector<32x128xf32>
    %20 = arith.subf %7, %19 : vector<32x128xf32>
    %cst_6 = arith.constant 9.99999974E-6 : f32
    %21 = vector.broadcast %cst_6 : f32 to vector<32x1xf32>
    %22 = arith.addf %18, %21 : vector<32x1xf32>
    %23 = math.rsqrt %22 : vector<32x1xf32>
    %24 = vector.broadcast %23 : vector<32x1xf32> to vector<32x128xf32>
    %25 = arith.mulf %20, %24 : vector<32x128xf32>
    %26 = vector.broadcast %1 : vector<1x128xf32> to vector<32x128xf32>
    %27 = arith.mulf %25, %26 : vector<32x128xf32>
    %28 = vector.broadcast %2 : vector<1x128xf32> to vector<32x128xf32>
    %29 = arith.addf %27, %28 : vector<32x128xf32>
    %30 = arith.truncf %29 : vector<32x128xf32> to vector<32x128xbf16>
    %c0_7 = arith.constant 0 : index
    %c0_8 = arith.constant 0 : index
    %31 = vector.load %arg2[%c0_7, %c0_8] : memref<128x384xbf16, #tpu.memory_space<vmem>>, vector<128x384xbf16>
    %cst_9 = arith.constant dense<0.000000e+00> : vector<32x384xf32>
    %32 = tpu.matmul %30, %31, %cst_9 {dimension_numbers = #tpu.dot_dimension_numbers<[1], [0], [0], [1], [0, 0, 1, 1], [], []>} : vector<32x128xbf16>, vector<128x384xbf16>, vector<32x384xf32> -> vector<32x384xf32>
    %33 = tpu.iota {dimensions = array<i32: 0>} : vector<16x16xi32>
    %34 = tpu.iota {dimensions = array<i32: 1>} : vector<16x16xi32>
    %35 = arith.cmpi sle, %34, %33 : vector<16x16xi32>
    %36 = vector.extract_strided_slice %32 {offsets = [0, 0], sizes = [16, 32], strides = [1, 1]} : vector<32x384xf32> to vector<16x32xf32>
    %37 = arith.truncf %36 : vector<16x32xf32> to vector<16x32xbf16>
    %38 = vector.extract_strided_slice %32 {offsets = [0, 128], sizes = [16, 32], strides = [1, 1]} : vector<32x384xf32> to vector<16x32xf32>
    %39 = arith.truncf %38 : vector<16x32xf32> to vector<16x32xbf16>
    %40 = vector.extract_strided_slice %32 {offsets = [0, 256], sizes = [16, 32], strides = [1, 1]} : vector<32x384xf32> to vector<16x32xf32>
    %41 = arith.truncf %40 : vector<16x32xf32> to vector<16x32xbf16>
    "tpu.trace_start"() <{level = 10 : i32, message = "qd,kd->qk"}> : () -> ()
    %cst_10 = arith.constant dense<0.000000e+00> : vector<16x16xf32>
    %42 = tpu.matmul %37, %39, %cst_10 {dimension_numbers = #tpu.dot_dimension_numbers<[1], [1], [0], [0], [0, 0, 1, 0], [], []>} : vector<16x32xbf16>, vector<16x32xbf16>, vector<16x16xf32> -> vector<16x16xf32>
    %cst_11 = arith.constant -1.000000e+30 : f32
    "tpu.trace_stop"() : () -> ()
    %43 = vector.broadcast %cst_11 : f32 to vector<16x16xf32>
    %44 = arith.select %35, %42, %43 : vector<16x16xi1>, vector<16x16xf32>
    %cst_12 = arith.constant dense<0xFF800000> : vector<16xf32>
    %45 = vector.multi_reduction <maximumf>, %44, %cst_12 [1] : vector<16x16xf32> to vector<16xf32>
    %46 = vector.shape_cast %45 : vector<16xf32> to vector<16x1xf32>
    %47 = vector.broadcast %46 : vector<16x1xf32> to vector<16x16xf32>
    %48 = arith.subf %44, %47 : vector<16x16xf32>
    %49 = math.exp %48 : vector<16x16xf32>
    %cst_13 = arith.constant dense<0.000000e+00> : vector<16xf32>
    %50 = vector.multi_reduction <add>, %49, %cst_13 [1] : vector<16x16xf32> to vector<16xf32>
    %51 = vector.shape_cast %50 : vector<16xf32> to vector<16x1xf32>
    %52 = tpu.reciprocal %51 {approx = true} : vector<16x1xf32> -> vector<16x1xf32>
    %53 = vector.broadcast %52 : vector<16x1xf32> to vector<16x16xf32>
    %54 = arith.mulf %49, %53 : vector<16x16xf32>
    %55 = arith.truncf %54 : vector<16x16xf32> to vector<16x16xbf16>
    %cst_14 = arith.constant dense<0.000000e+00> : vector<16x32xf32>
    %56 = tpu.matmul %55, %41, %cst_14 {dimension_numbers = #tpu.dot_dimension_numbers<[1], [0], [0], [1], [0, 0, 1, 1], [], []>} : vector<16x16xbf16>, vector<16x32xbf16>, vector<16x32xf32> -> vector<16x32xf32>
    %57 = vector.extract_strided_slice %32 {offsets = [0, 32], sizes = [16, 32], strides = [1, 1]} : vector<32x384xf32> to vector<16x32xf32>
    %58 = arith.truncf %57 : vector<16x32xf32> to vector<16x32xbf16>
    %59 = vector.extract_strided_slice %32 {offsets = [0, 160], sizes = [16, 32], strides = [1, 1]} : vector<32x384xf32> to vector<16x32xf32>
    %60 = arith.truncf %59 : vector<16x32xf32> to vector<16x32xbf16>
    %61 = vector.extract_strided_slice %32 {offsets = [0, 288], sizes = [16, 32], strides = [1, 1]} : vector<32x384xf32> to vector<16x32xf32>
    %62 = arith.truncf %61 : vector<16x32xf32> to vector<16x32xbf16>
    "tpu.trace_start"() <{level = 10 : i32, message = "qd,kd->qk"}> : () -> ()
    %cst_15 = arith.constant dense<0.000000e+00> : vector<16x16xf32>
    %63 = tpu.matmul %58, %60, %cst_15 {dimension_numbers = #tpu.dot_dimension_numbers<[1], [1], [0], [0], [0, 0, 1, 0], [], []>} : vector<16x32xbf16>, vector<16x32xbf16>, vector<16x16xf32> -> vector<16x16xf32>
    %cst_16 = arith.constant -1.000000e+30 : f32
    "tpu.trace_stop"() : () -> ()
    %64 = vector.broadcast %cst_16 : f32 to vector<16x16xf32>
    %65 = arith.select %35, %63, %64 : vector<16x16xi1>, vector<16x16xf32>
    %cst_17 = arith.constant dense<0xFF800000> : vector<16xf32>
    %66 = vector.multi_reduction <maximumf>, %65, %cst_17 [1] : vector<16x16xf32> to vector<16xf32>
    %67 = vector.shape_cast %66 : vector<16xf32> to vector<16x1xf32>
    %68 = vector.broadcast %67 : vector<16x1xf32> to vector<16x16xf32>
    %69 = arith.subf %65, %68 : vector<16x16xf32>
    %70 = math.exp %69 : vector<16x16xf32>
    %cst_18 = arith.constant dense<0.000000e+00> : vector<16xf32>
    %71 = vector.multi_reduction <add>, %70, %cst_18 [1] : vector<16x16xf32> to vector<16xf32>
    %72 = vector.shape_cast %71 : vector<16xf32> to vector<16x1xf32>
    %73 = tpu.reciprocal %72 {approx = true} : vector<16x1xf32> -> vector<16x1xf32>
    %74 = vector.broadcast %73 : vector<16x1xf32> to vector<16x16xf32>
    %75 = arith.mulf %70, %74 : vector<16x16xf32>
    %76 = arith.truncf %75 : vector<16x16xf32> to vector<16x16xbf16>
    %cst_19 = arith.constant dense<0.000000e+00> : vector<16x32xf32>
    %77 = tpu.matmul %76, %62, %cst_19 {dimension_numbers = #tpu.dot_dimension_numbers<[1], [0], [0], [1], [0, 0, 1, 1], [], []>} : vector<16x16xbf16>, vector<16x32xbf16>, vector<16x32xf32> -> vector<16x32xf32>
    %78 = vector.extract_strided_slice %32 {offsets = [0, 64], sizes = [16, 32], strides = [1, 1]} : vector<32x384xf32> to vector<16x32xf32>
    %79 = arith.truncf %78 : vector<16x32xf32> to vector<16x32xbf16>
    %80 = vector.extract_strided_slice %32 {offsets = [0, 192], sizes = [16, 32], strides = [1, 1]} : vector<32x384xf32> to vector<16x32xf32>
    %81 = arith.truncf %80 : vector<16x32xf32> to vector<16x32xbf16>
    %82 = vector.extract_strided_slice %32 {offsets = [0, 320], sizes = [16, 32], strides = [1, 1]} : vector<32x384xf32> to vector<16x32xf32>
    %83 = arith.truncf %82 : vector<16x32xf32> to vector<16x32xbf16>
    "tpu.trace_start"() <{level = 10 : i32, message = "qd,kd->qk"}> : () -> ()
    %cst_20 = arith.constant dense<0.000000e+00> : vector<16x16xf32>
    %84 = tpu.matmul %79, %81, %cst_20 {dimension_numbers = #tpu.dot_dimension_numbers<[1], [1], [0], [0], [0, 0, 1, 0], [], []>} : vector<16x32xbf16>, vector<16x32xbf16>, vector<16x16xf32> -> vector<16x16xf32>
    %cst_21 = arith.constant -1.000000e+30 : f32
    "tpu.trace_stop"() : () -> ()
    %85 = vector.broadcast %cst_21 : f32 to vector<16x16xf32>
    %86 = arith.select %35, %84, %85 : vector<16x16xi1>, vector<16x16xf32>
    %cst_22 = arith.constant dense<0xFF800000> : vector<16xf32>
    %87 = vector.multi_reduction <maximumf>, %86, %cst_22 [1] : vector<16x16xf32> to vector<16xf32>
    %88 = vector.shape_cast %87 : vector<16xf32> to vector<16x1xf32>
    %89 = vector.broadcast %88 : vector<16x1xf32> to vector<16x16xf32>
    %90 = arith.subf %86, %89 : vector<16x16xf32>
    %91 = math.exp %90 : vector<16x16xf32>
    %cst_23 = arith.constant dense<0.000000e+00> : vector<16xf32>
    %92 = vector.multi_reduction <add>, %91, %cst_23 [1] : vector<16x16xf32> to vector<16xf32>
    %93 = vector.shape_cast %92 : vector<16xf32> to vector<16x1xf32>
    %94 = tpu.reciprocal %93 {approx = true} : vector<16x1xf32> -> vector<16x1xf32>
    %95 = vector.broadcast %94 : vector<16x1xf32> to vector<16x16xf32>
    %96 = arith.mulf %91, %95 : vector<16x16xf32>
    %97 = arith.truncf %96 : vector<16x16xf32> to vector<16x16xbf16>
    %cst_24 = arith.constant dense<0.000000e+00> : vector<16x32xf32>
    %98 = tpu.matmul %97, %83, %cst_24 {dimension_numbers = #tpu.dot_dimension_numbers<[1], [0], [0], [1], [0, 0, 1, 1], [], []>} : vector<16x16xbf16>, vector<16x32xbf16>, vector<16x32xf32> -> vector<16x32xf32>
    %99 = vector.extract_strided_slice %32 {offsets = [0, 96], sizes = [16, 32], strides = [1, 1]} : vector<32x384xf32> to vector<16x32xf32>
    %100 = arith.truncf %99 : vector<16x32xf32> to vector<16x32xbf16>
    %101 = vector.extract_strided_slice %32 {offsets = [0, 224], sizes = [16, 32], strides = [1, 1]} : vector<32x384xf32> to vector<16x32xf32>
    %102 = arith.truncf %101 : vector<16x32xf32> to vector<16x32xbf16>
    %103 = vector.extract_strided_slice %32 {offsets = [0, 352], sizes = [16, 32], strides = [1, 1]} : vector<32x384xf32> to vector<16x32xf32>
    %104 = arith.truncf %103 : vector<16x32xf32> to vector<16x32xbf16>
    "tpu.trace_start"() <{level = 10 : i32, message = "qd,kd->qk"}> : () -> ()
    %cst_25 = arith.constant dense<0.000000e+00> : vector<16x16xf32>
    %105 = tpu.matmul %100, %102, %cst_25 {dimension_numbers = #tpu.dot_dimension_numbers<[1], [1], [0], [0], [0, 0, 1, 0], [], []>} : vector<16x32xbf16>, vector<16x32xbf16>, vector<16x16xf32> -> vector<16x16xf32>
    %cst_26 = arith.constant -1.000000e+30 : f32
    "tpu.trace_stop"() : () -> ()
    %106 = vector.broadcast %cst_26 : f32 to vector<16x16xf32>
    %107 = arith.select %35, %105, %106 : vector<16x16xi1>, vector<16x16xf32>
    %cst_27 = arith.constant dense<0xFF800000> : vector<16xf32>
    %108 = vector.multi_reduction <maximumf>, %107, %cst_27 [1] : vector<16x16xf32> to vector<16xf32>
    %109 = vector.shape_cast %108 : vector<16xf32> to vector<16x1xf32>
    %110 = vector.broadcast %109 : vector<16x1xf32> to vector<16x16xf32>
    %111 = arith.subf %107, %110 : vector<16x16xf32>
    %112 = math.exp %111 : vector<16x16xf32>
    %cst_28 = arith.constant dense<0.000000e+00> : vector<16xf32>
    %113 = vector.multi_reduction <add>, %112, %cst_28 [1] : vector<16x16xf32> to vector<16xf32>
    %114 = vector.shape_cast %113 : vector<16xf32> to vector<16x1xf32>
    %115 = tpu.reciprocal %114 {approx = true} : vector<16x1xf32> -> vector<16x1xf32>
    %116 = vector.broadcast %115 : vector<16x1xf32> to vector<16x16xf32>
    %117 = arith.mulf %112, %116 : vector<16x16xf32>
    %118 = arith.truncf %117 : vector<16x16xf32> to vector<16x16xbf16>
    %cst_29 = arith.constant dense<0.000000e+00> : vector<16x32xf32>
    %119 = tpu.matmul %118, %104, %cst_29 {dimension_numbers = #tpu.dot_dimension_numbers<[1], [0], [0], [1], [0, 0, 1, 1], [], []>} : vector<16x16xbf16>, vector<16x32xbf16>, vector<16x32xf32> -> vector<16x32xf32>
    %120 = tpu.concatenate %56, %77, %98, %119 in 1 : vector<16x32xf32>, vector<16x32xf32>, vector<16x32xf32>, vector<16x32xf32> -> vector<16x128xf32>
    %121 = vector.extract_strided_slice %32 {offsets = [16, 0], sizes = [16, 32], strides = [1, 1]} : vector<32x384xf32> to vector<16x32xf32>
    %122 = arith.truncf %121 : vector<16x32xf32> to vector<16x32xbf16>
    %123 = vector.extract_strided_slice %32 {offsets = [16, 128], sizes = [16, 32], strides = [1, 1]} : vector<32x384xf32> to vector<16x32xf32>
    %124 = arith.truncf %123 : vector<16x32xf32> to vector<16x32xbf16>
    %125 = vector.extract_strided_slice %32 {offsets = [16, 256], sizes = [16, 32], strides = [1, 1]} : vector<32x384xf32> to vector<16x32xf32>
    %126 = arith.truncf %125 : vector<16x32xf32> to vector<16x32xbf16>
    "tpu.trace_start"() <{level = 10 : i32, message = "qd,kd->qk"}> : () -> ()
    %cst_30 = arith.constant dense<0.000000e+00> : vector<16x16xf32>
    %127 = tpu.matmul %122, %124, %cst_30 {dimension_numbers = #tpu.dot_dimension_numbers<[1], [1], [0], [0], [0, 0, 1, 0], [], []>} : vector<16x32xbf16>, vector<16x32xbf16>, vector<16x16xf32> -> vector<16x16xf32>
    %cst_31 = arith.constant -1.000000e+30 : f32
    "tpu.trace_stop"() : () -> ()
    %128 = vector.broadcast %cst_31 : f32 to vector<16x16xf32>
    %129 = arith.select %35, %127, %128 : vector<16x16xi1>, vector<16x16xf32>
    %cst_32 = arith.constant dense<0xFF800000> : vector<16xf32>
    %130 = vector.multi_reduction <maximumf>, %129, %cst_32 [1] : vector<16x16xf32> to vector<16xf32>
    %131 = vector.shape_cast %130 : vector<16xf32> to vector<16x1xf32>
    %132 = vector.broadcast %131 : vector<16x1xf32> to vector<16x16xf32>
    %133 = arith.subf %129, %132 : vector<16x16xf32>
    %134 = math.exp %133 : vector<16x16xf32>
    %cst_33 = arith.constant dense<0.000000e+00> : vector<16xf32>
    %135 = vector.multi_reduction <add>, %134, %cst_33 [1] : vector<16x16xf32> to vector<16xf32>
    %136 = vector.shape_cast %135 : vector<16xf32> to vector<16x1xf32>
    %137 = tpu.reciprocal %136 {approx = true} : vector<16x1xf32> -> vector<16x1xf32>
    %138 = vector.broadcast %137 : vector<16x1xf32> to vector<16x16xf32>
    %139 = arith.mulf %134, %138 : vector<16x16xf32>
    %140 = arith.truncf %139 : vector<16x16xf32> to vector<16x16xbf16>
    %cst_34 = arith.constant dense<0.000000e+00> : vector<16x32xf32>
    %141 = tpu.matmul %140, %126, %cst_34 {dimension_numbers = #tpu.dot_dimension_numbers<[1], [0], [0], [1], [0, 0, 1, 1], [], []>} : vector<16x16xbf16>, vector<16x32xbf16>, vector<16x32xf32> -> vector<16x32xf32>
    %142 = vector.extract_strided_slice %32 {offsets = [16, 32], sizes = [16, 32], strides = [1, 1]} : vector<32x384xf32> to vector<16x32xf32>
    %143 = arith.truncf %142 : vector<16x32xf32> to vector<16x32xbf16>
    %144 = vector.extract_strided_slice %32 {offsets = [16, 160], sizes = [16, 32], strides = [1, 1]} : vector<32x384xf32> to vector<16x32xf32>
    %145 = arith.truncf %144 : vector<16x32xf32> to vector<16x32xbf16>
    %146 = vector.extract_strided_slice %32 {offsets = [16, 288], sizes = [16, 32], strides = [1, 1]} : vector<32x384xf32> to vector<16x32xf32>
    %147 = arith.truncf %146 : vector<16x32xf32> to vector<16x32xbf16>
    "tpu.trace_start"() <{level = 10 : i32, message = "qd,kd->qk"}> : () -> ()
    %cst_35 = arith.constant dense<0.000000e+00> : vector<16x16xf32>
    %148 = tpu.matmul %143, %145, %cst_35 {dimension_numbers = #tpu.dot_dimension_numbers<[1], [1], [0], [0], [0, 0, 1, 0], [], []>} : vector<16x32xbf16>, vector<16x32xbf16>, vector<16x16xf32> -> vector<16x16xf32>
    %cst_36 = arith.constant -1.000000e+30 : f32
    "tpu.trace_stop"() : () -> ()
    %149 = vector.broadcast %cst_36 : f32 to vector<16x16xf32>
    %150 = arith.select %35, %148, %149 : vector<16x16xi1>, vector<16x16xf32>
    %cst_37 = arith.constant dense<0xFF800000> : vector<16xf32>
    %151 = vector.multi_reduction <maximumf>, %150, %cst_37 [1] : vector<16x16xf32> to vector<16xf32>
    %152 = vector.shape_cast %151 : vector<16xf32> to vector<16x1xf32>
    %153 = vector.broadcast %152 : vector<16x1xf32> to vector<16x16xf32>
    %154 = arith.subf %150, %153 : vector<16x16xf32>
    %155 = math.exp %154 : vector<16x16xf32>
    %cst_38 = arith.constant dense<0.000000e+00> : vector<16xf32>
    %156 = vector.multi_reduction <add>, %155, %cst_38 [1] : vector<16x16xf32> to vector<16xf32>
    %157 = vector.shape_cast %156 : vector<16xf32> to vector<16x1xf32>
    %158 = tpu.reciprocal %157 {approx = true} : vector<16x1xf32> -> vector<16x1xf32>
    %159 = vector.broadcast %158 : vector<16x1xf32> to vector<16x16xf32>
    %160 = arith.mulf %155, %159 : vector<16x16xf32>
    %161 = arith.truncf %160 : vector<16x16xf32> to vector<16x16xbf16>
    %cst_39 = arith.constant dense<0.000000e+00> : vector<16x32xf32>
    %162 = tpu.matmul %161, %147, %cst_39 {dimension_numbers = #tpu.dot_dimension_numbers<[1], [0], [0], [1], [0, 0, 1, 1], [], []>} : vector<16x16xbf16>, vector<16x32xbf16>, vector<16x32xf32> -> vector<16x32xf32>
    %163 = vector.extract_strided_slice %32 {offsets = [16, 64], sizes = [16, 32], strides = [1, 1]} : vector<32x384xf32> to vector<16x32xf32>
    %164 = arith.truncf %163 : vector<16x32xf32> to vector<16x32xbf16>
    %165 = vector.extract_strided_slice %32 {offsets = [16, 192], sizes = [16, 32], strides = [1, 1]} : vector<32x384xf32> to vector<16x32xf32>
    %166 = arith.truncf %165 : vector<16x32xf32> to vector<16x32xbf16>
    %167 = vector.extract_strided_slice %32 {offsets = [16, 320], sizes = [16, 32], strides = [1, 1]} : vector<32x384xf32> to vector<16x32xf32>
    %168 = arith.truncf %167 : vector<16x32xf32> to vector<16x32xbf16>
    "tpu.trace_start"() <{level = 10 : i32, message = "qd,kd->qk"}> : () -> ()
    %cst_40 = arith.constant dense<0.000000e+00> : vector<16x16xf32>
    %169 = tpu.matmul %164, %166, %cst_40 {dimension_numbers = #tpu.dot_dimension_numbers<[1], [1], [0], [0], [0, 0, 1, 0], [], []>} : vector<16x32xbf16>, vector<16x32xbf16>, vector<16x16xf32> -> vector<16x16xf32>
    %cst_41 = arith.constant -1.000000e+30 : f32
    "tpu.trace_stop"() : () -> ()
    %170 = vector.broadcast %cst_41 : f32 to vector<16x16xf32>
    %171 = arith.select %35, %169, %170 : vector<16x16xi1>, vector<16x16xf32>
    %cst_42 = arith.constant dense<0xFF800000> : vector<16xf32>
    %172 = vector.multi_reduction <maximumf>, %171, %cst_42 [1] : vector<16x16xf32> to vector<16xf32>
    %173 = vector.shape_cast %172 : vector<16xf32> to vector<16x1xf32>
    %174 = vector.broadcast %173 : vector<16x1xf32> to vector<16x16xf32>
    %175 = arith.subf %171, %174 : vector<16x16xf32>
    %176 = math.exp %175 : vector<16x16xf32>
    %cst_43 = arith.constant dense<0.000000e+00> : vector<16xf32>
    %177 = vector.multi_reduction <add>, %176, %cst_43 [1] : vector<16x16xf32> to vector<16xf32>
    %178 = vector.shape_cast %177 : vector<16xf32> to vector<16x1xf32>
    %179 = tpu.reciprocal %178 {approx = true} : vector<16x1xf32> -> vector<16x1xf32>
    %180 = vector.broadcast %179 : vector<16x1xf32> to vector<16x16xf32>
    %181 = arith.mulf %176, %180 : vector<16x16xf32>
    %182 = arith.truncf %181 : vector<16x16xf32> to vector<16x16xbf16>
    %cst_44 = arith.constant dense<0.000000e+00> : vector<16x32xf32>
    %183 = tpu.matmul %182, %168, %cst_44 {dimension_numbers = #tpu.dot_dimension_numbers<[1], [0], [0], [1], [0, 0, 1, 1], [], []>} : vector<16x16xbf16>, vector<16x32xbf16>, vector<16x32xf32> -> vector<16x32xf32>
    %184 = vector.extract_strided_slice %32 {offsets = [16, 96], sizes = [16, 32], strides = [1, 1]} : vector<32x384xf32> to vector<16x32xf32>
    %185 = arith.truncf %184 : vector<16x32xf32> to vector<16x32xbf16>
    %186 = vector.extract_strided_slice %32 {offsets = [16, 224], sizes = [16, 32], strides = [1, 1]} : vector<32x384xf32> to vector<16x32xf32>
    %187 = arith.truncf %186 : vector<16x32xf32> to vector<16x32xbf16>
    %188 = vector.extract_strided_slice %32 {offsets = [16, 352], sizes = [16, 32], strides = [1, 1]} : vector<32x384xf32> to vector<16x32xf32>
    %189 = arith.truncf %188 : vector<16x32xf32> to vector<16x32xbf16>
    "tpu.trace_start"() <{level = 10 : i32, message = "qd,kd->qk"}> : () -> ()
    %cst_45 = arith.constant dense<0.000000e+00> : vector<16x16xf32>
    %190 = tpu.matmul %185, %187, %cst_45 {dimension_numbers = #tpu.dot_dimension_numbers<[1], [1], [0], [0], [0, 0, 1, 0], [], []>} : vector<16x32xbf16>, vector<16x32xbf16>, vector<16x16xf32> -> vector<16x16xf32>
    %cst_46 = arith.constant -1.000000e+30 : f32
    "tpu.trace_stop"() : () -> ()
    %191 = vector.broadcast %cst_46 : f32 to vector<16x16xf32>
    %192 = arith.select %35, %190, %191 : vector<16x16xi1>, vector<16x16xf32>
    %cst_47 = arith.constant dense<0xFF800000> : vector<16xf32>
    %193 = vector.multi_reduction <maximumf>, %192, %cst_47 [1] : vector<16x16xf32> to vector<16xf32>
    %194 = vector.shape_cast %193 : vector<16xf32> to vector<16x1xf32>
    %195 = vector.broadcast %194 : vector<16x1xf32> to vector<16x16xf32>
    %196 = arith.subf %192, %195 : vector<16x16xf32>
    %197 = math.exp %196 : vector<16x16xf32>
    %cst_48 = arith.constant dense<0.000000e+00> : vector<16xf32>
    %198 = vector.multi_reduction <add>, %197, %cst_48 [1] : vector<16x16xf32> to vector<16xf32>
    %199 = vector.shape_cast %198 : vector<16xf32> to vector<16x1xf32>
    %200 = tpu.reciprocal %199 {approx = true} : vector<16x1xf32> -> vector<16x1xf32>
    %201 = vector.broadcast %200 : vector<16x1xf32> to vector<16x16xf32>
    %202 = arith.mulf %197, %201 : vector<16x16xf32>
    %203 = arith.truncf %202 : vector<16x16xf32> to vector<16x16xbf16>
    %cst_49 = arith.constant dense<0.000000e+00> : vector<16x32xf32>
    %204 = tpu.matmul %203, %189, %cst_49 {dimension_numbers = #tpu.dot_dimension_numbers<[1], [0], [0], [1], [0, 0, 1, 1], [], []>} : vector<16x16xbf16>, vector<16x32xbf16>, vector<16x32xf32> -> vector<16x32xf32>
    %205 = tpu.concatenate %141, %162, %183, %204 in 1 : vector<16x32xf32>, vector<16x32xf32>, vector<16x32xf32>, vector<16x32xf32> -> vector<16x128xf32>
    %206 = tpu.concatenate %120, %205 in 0 : vector<16x128xf32>, vector<16x128xf32> -> vector<32x128xf32>
    %207 = arith.truncf %206 : vector<32x128xf32> to vector<32x128xbf16>
    %c0_50 = arith.constant 0 : index
    %c0_51 = arith.constant 0 : index
    %208 = vector.load %arg3[%c0_50, %c0_51] : memref<128x128xbf16, #tpu.memory_space<vmem>>, vector<128x128xbf16>
    %cst_52 = arith.constant dense<0.000000e+00> : vector<32x128xf32>
    %209 = tpu.matmul %207, %208, %cst_52 {dimension_numbers = #tpu.dot_dimension_numbers<[1], [0], [0], [1], [0, 0, 1, 1], [], []>} : vector<32x128xbf16>, vector<128x128xbf16>, vector<32x128xf32> -> vector<32x128xf32>
    %210 = vector.broadcast %5 : vector<1x128xf32> to vector<32x128xf32>
    %211 = arith.addf %209, %210 : vector<32x128xf32>
    %212 = arith.addf %29, %211 : vector<32x128xf32>
    %cst_53 = arith.constant dense<0.000000e+00> : vector<32xf32>
    %213 = vector.multi_reduction <add>, %212, %cst_53 [1] : vector<32x128xf32> to vector<32xf32>
    %214 = vector.shape_cast %213 : vector<32xf32> to vector<32x1xf32>
    %cst_54 = arith.constant 1.280000e+02 : f32
    %215 = vector.broadcast %cst_54 : f32 to vector<32x1xf32>
    %216 = arith.divf %214, %215 : vector<32x1xf32>
    %217 = vector.broadcast %216 : vector<32x1xf32> to vector<32x128xf32>
    %218 = arith.subf %212, %217 : vector<32x128xf32>
    %219 = arith.mulf %218, %218 : vector<32x128xf32>
    %cst_55 = arith.constant dense<0.000000e+00> : vector<32xf32>
    %220 = vector.multi_reduction <add>, %219, %cst_55 [1] : vector<32x128xf32> to vector<32xf32>
    %221 = vector.shape_cast %220 : vector<32xf32> to vector<32x1xf32>
    %cst_56 = arith.constant 1.280000e+02 : f32
    %222 = vector.broadcast %cst_56 : f32 to vector<32x1xf32>
    %223 = arith.divf %221, %222 : vector<32x1xf32>
    %224 = vector.broadcast %216 : vector<32x1xf32> to vector<32x128xf32>
    %225 = arith.subf %212, %224 : vector<32x128xf32>
    %cst_57 = arith.constant 9.99999974E-6 : f32
    %226 = vector.broadcast %cst_57 : f32 to vector<32x1xf32>
    %227 = arith.addf %223, %226 : vector<32x1xf32>
    %228 = math.rsqrt %227 : vector<32x1xf32>
    %229 = vector.broadcast %228 : vector<32x1xf32> to vector<32x128xf32>
    %230 = arith.mulf %225, %229 : vector<32x128xf32>
    %231 = vector.broadcast %3 : vector<1x128xf32> to vector<32x128xf32>
    %232 = arith.mulf %230, %231 : vector<32x128xf32>
    %233 = vector.broadcast %4 : vector<1x128xf32> to vector<32x128xf32>
    %234 = arith.addf %232, %233 : vector<32x128xf32>
    %235 = arith.truncf %234 : vector<32x128xf32> to vector<32x128xbf16>
    %c0_58 = arith.constant 0 : index
    %c0_59 = arith.constant 0 : index
    %236 = vector.load %arg4[%c0_58, %c0_59] : memref<128x512xbf16, #tpu.memory_space<vmem>>, vector<128x512xbf16>
    %cst_60 = arith.constant dense<0.000000e+00> : vector<32x512xf32>
    %237 = tpu.matmul %235, %236, %cst_60 {dimension_numbers = #tpu.dot_dimension_numbers<[1], [0], [0], [1], [0, 0, 1, 1], [], []>} : vector<32x128xbf16>, vector<128x512xbf16>, vector<32x512xf32> -> vector<32x512xf32>
    %c0_61 = arith.constant 0 : index
    %c0_62 = arith.constant 0 : index
    %238 = vector.load %arg7[%c0_61, %c0_62] : memref<1x512xf32, #tpu.memory_space<vmem>>, vector<1x512xf32>
    %239 = vector.broadcast %238 : vector<1x512xf32> to vector<32x512xf32>
    %240 = arith.addf %237, %239 : vector<32x512xf32>
    %cst_63 = arith.constant 0.000000e+00 : f32
    %241 = vector.broadcast %cst_63 : f32 to vector<32x512xf32>
    %242 = arith.maximumf %240, %241 : vector<32x512xf32>
    %243 = arith.truncf %242 : vector<32x512xf32> to vector<32x512xbf16>
    %c0_64 = arith.constant 0 : index
    %c0_65 = arith.constant 0 : index
    %244 = vector.load %arg5[%c0_64, %c0_65] : memref<512x128xbf16, #tpu.memory_space<vmem>>, vector<512x128xbf16>
    %cst_66 = arith.constant dense<0.000000e+00> : vector<32x128xf32>
    %245 = tpu.matmul %243, %244, %cst_66 {dimension_numbers = #tpu.dot_dimension_numbers<[1], [0], [0], [1], [0, 0, 1, 1], [], []>} : vector<32x512xbf16>, vector<512x128xbf16>, vector<32x128xf32> -> vector<32x128xf32>
    %246 = vector.broadcast %6 : vector<1x128xf32> to vector<32x128xf32>
    %247 = arith.addf %245, %246 : vector<32x128xf32>
    %248 = arith.addf %234, %247 : vector<32x128xf32>
    %c0_67 = arith.constant 0 : index
    %c0_68 = arith.constant 0 : index
    %249 = vector.load %arg8[%c0_67, %c0_68] : memref<32x128xf32, #tpu.memory_space<vmem>>, vector<32x128xf32>
    tpu.vector_store %arg8[%c0_67, %c0_68], %248 {strides = array<i32>} : memref<32x128xf32, #tpu.memory_space<vmem>>, vector<32x128xf32>,
    return
  }
  func.func @transform_0(%arg0: i32) -> (i32, i32) {
    %c0_i32 = arith.constant 0 : i32
    %c0_i32_0 = arith.constant 0 : i32
    return %arg0, %c0_i32 : i32, i32
  }
  func.func @transform_1(%arg0: i32) -> (i32, i32) {
    %c0_i32 = arith.constant 0 : i32
    %c0_i32_0 = arith.constant 0 : i32
    %c0_i32_1 = arith.constant 0 : i32
    return %c0_i32, %c0_i32_0 : i32, i32
  }
  func.func @transform_2(%arg0: i32) -> (i32, i32) {
    %c0_i32 = arith.constant 0 : i32
    %c0_i32_0 = arith.constant 0 : i32
    %c0_i32_1 = arith.constant 0 : i32
    return %c0_i32, %c0_i32_0 : i32, i32
  }
  func.func @transform_3(%arg0: i32) -> (i32, i32) {
    %c0_i32 = arith.constant 0 : i32
    %c0_i32_0 = arith.constant 0 : i32
    %c0_i32_1 = arith.constant 0 : i32
    return %c0_i32, %c0_i32_0 : i32, i32
  }
  func.func @transform_4(%arg0: i32) -> (i32, i32) {
    %c0_i32 = arith.constant 0 : i32
    %c0_i32_0 = arith.constant 0 : i32
    %c0_i32_1 = arith.constant 0 : i32
    return %c0_i32, %c0_i32_0 : i32, i32
  }
  func.func @transform_5(%arg0: i32) -> (i32, i32) {
    %c0_i32 = arith.constant 0 : i32
    %c0_i32_0 = arith.constant 0 : i32
    %c0_i32_1 = arith.constant 0 : i32
    return %c0_i32, %c0_i32_0 : i32, i32
  }
  func.func @transform_6(%arg0: i32) -> (i32, i32) {
    %c0_i32 = arith.constant 0 : i32
    %c0_i32_0 = arith.constant 0 : i32
    %c0_i32_1 = arith.constant 0 : i32
    return %c0_i32, %c0_i32_0 : i32, i32
  }
  func.func @transform_7(%arg0: i32) -> (i32, i32) {
    %c0_i32 = arith.constant 0 : i32
    %c0_i32_0 = arith.constant 0 : i32
    return %arg0, %c0_i32 : i32, i32
  }
}

</mosaic_0001>

<llo_original>
// kernel: tpu_custom_call.1
$region0: #{tpu_custom_call.1}
  #allocation0 [shape = 'u32[]', space=smem, size = 0x4, offset = 0x4, fixed_abs, tag = 'smem constant byte address 0x4 - core index']
  #allocation1 [shape = 'u32[144,128]{1,0:T(1,128)}', space=vmem, size = 0x12000, scoped, tag = 'internal scratch']
  %s0 = inlined_call_operand.hbm [shape: f32[32,128], index: 0, kind: input, shape index: {}]
  %s1 = inlined_call_operand.hbm [shape: bf16[128,384], index: 1, kind: input, shape index: {}]
  %s2 = inlined_call_operand.hbm [shape: bf16[128,128], index: 2, kind: input, shape index: {}]
  %s3 = inlined_call_operand.hbm [shape: bf16[128,512], index: 3, kind: input, shape index: {}]
  %s4 = inlined_call_operand.hbm [shape: bf16[512,128], index: 4, kind: input, shape index: {}]
  %s5 = inlined_call_operand.vmem [shape: f32[6,128], index: 5, kind: input, shape index: {}]
  %s6 = inlined_call_operand.vmem [shape: f32[1,512], index: 6, kind: input, shape index: {}]
  %s7 = inlined_call_operand.hbm [shape: f32[32,128], index: 7, kind: output, shape index: {}]
  %s8 = sld [smem:[#allocation0]]
  $region58: #{tpu_custom_call.1} parent=0
    _
  %s10 = ssub.s32 1, %s8
  %s11 = scalar_select 0, %s10, %s8
  $region1: #{tpu_custom_call.1} parent=0
    #allocation2 [shape = 'u8[16384]{0}', space=vmem, size = 0x4000, scoped, tag = 'input window, operand 0, single buffered']
    #allocation3 [shape = 's32[1]{0}', space=sflag, size = 0x4, scoped, tag = 'scoped memory for tpu_custom_call.1']
    #allocation4 [shape = 's32[1]{0}', space=sflag, size = 0x4, scoped, tag = 'scoped memory for tpu_custom_call.1']
    #allocation5 [shape = 'u8[98304]{0}', space=vmem, size = 0x18000, scoped, tag = 'input window, operand 1, single buffered']
    #allocation6 [shape = 's32[1]{0}', space=sflag, size = 0x4, scoped, tag = 'scoped memory for tpu_custom_call.1']
    #allocation7 [shape = 'u8[32768]{0}', space=vmem, size = 0x8000, scoped, tag = 'input window, operand 2, single buffered']
    #allocation8 [shape = 'u8[131072]{0}', space=vmem, size = 0x20000, scoped, tag = 'input window, operand 3, single buffered']
    #allocation9 [shape = 's32[1]{0}', space=sflag, size = 0x4, scoped, tag = 'scoped memory for tpu_custom_call.1']
    #allocation10 [shape = 'u8[131072]{0}', space=vmem, size = 0x20000, scoped, tag = 'input window, operand 4, single buffered']
    #allocation11 [shape = 'u8[16384]{0}', space=vmem, size = 0x4000, scoped, tag = 'output window, operand 0, single buffered']
    %12 = vsyncpa [#allocation3], 0
    %13 = vsyncpa [#allocation6], 0
    %14 = vsyncpa [#allocation9], 0
    %15 = vsyncpa [#allocation4], 0
    // Predicated region
    $region2: #{tpu_custom_call.1} parent=1 // pred_check
      _
    $region3: #{tpu_custom_call.1} parent=1 // pred_check_branch
      %17 = sbr.rel (0) target = $region5
    $region4: #{tpu_custom_call.1} parent=1 // pred_region
      %s19 = ssub.s32 512, 512
      %20 = vsyncadd [#allocation3], %s19
      %s21 = sshll.u32 [#allocation2], 4
      %s22 = int_to_ptr.vmem [resolvable:$true] %s21
      %27 = dma.hbm_to_vmem [thread:$0]  %s0, 512, %s22, [#allocation3], 128, 128, 8
    $region5: #{tpu_custom_call.1} parent=1 // pred_fallthru
      _
    // Predicated region
    $region6: #{tpu_custom_call.1} parent=1 // pred_check
      _
    $region7: #{tpu_custom_call.1} parent=1 // pred_check_branch
      %29 = sbr.rel (0) target = $region9
    $region8: #{tpu_custom_call.1} parent=1 // pred_region
      %s31 = ssub.s32 3072, 3072
      %32 = vsyncadd [#allocation6], %s31
      %s33 = sshll.u32 [#allocation5], 4
      %s34 = int_to_ptr.vmem [resolvable:$true] %s33
      %39 = dma.hbm_to_vmem [thread:$0]  %s1, 3072, %s34, [#allocation6], 192, 192, 12
    $region9: #{tpu_custom_call.1} parent=1 // pred_fallthru
      _
    // Predicated region
    $region10: #{tpu_custom_call.1} parent=1 // pred_check
      _
    $region11: #{tpu_custom_call.1} parent=1 // pred_check_branch
      %41 = sbr.rel (0) target = $region13
    $region12: #{tpu_custom_call.1} parent=1 // pred_region
      %s43 = ssub.s32 1024, 1024
      %44 = vsyncadd [#allocation6], %s43
      %s45 = sshll.u32 [#allocation7], 4
      %s46 = int_to_ptr.vmem [resolvable:$true] %s45
      %51 = dma.hbm_to_vmem [thread:$0]  %s2, 1024, %s46, [#allocation6], 64, 64, 4
    $region13: #{tpu_custom_call.1} parent=1 // pred_fallthru
      _
    // Predicated region
    $region14: #{tpu_custom_call.1} parent=1 // pred_check
      _
    $region15: #{tpu_custom_call.1} parent=1 // pred_check_branch
      %53 = sbr.rel (0) target = $region17
    $region16: #{tpu_custom_call.1} parent=1 // pred_region
      %s55 = ssub.s32 4096, 4096
      %56 = vsyncadd [#allocation9], %s55
      %s57 = sshll.u32 [#allocation8], 4
      %s58 = int_to_ptr.vmem [resolvable:$true] %s57
      %63 = dma.hbm_to_vmem [thread:$0]  %s3, 4096, %s58, [#allocation9], 256, 256, 16
    $region17: #{tpu_custom_call.1} parent=1 // pred_fallthru
      _
    // Predicated region
    $region18: #{tpu_custom_call.1} parent=1 // pred_check
      _
    $region19: #{tpu_custom_call.1} parent=1 // pred_check_branch
      %65 = sbr.rel (0) target = $region21
    $region20: #{tpu_custom_call.1} parent=1 // pred_region
      %s67 = ssub.s32 4096, 4096
      %68 = vsyncadd [#allocation9], %s67
      %s69 = sshll.u32 [#allocation10], 4
      %s70 = int_to_ptr.vmem [resolvable:$true] %s69
      %75 = dma.hbm_to_vmem [thread:$0]  %s4, 4096, %s70, [#allocation9], 64, 64, 4
    $region21: #{tpu_custom_call.1} parent=1 // pred_fallthru
      _
    // Predicated region
    $region22: #{tpu_custom_call.1} parent=1 // pred_check
      _
    $region23: #{tpu_custom_call.1} parent=1 // pred_check_branch
      %77 = sbr.rel (0) target = $region25
    $region24: #{tpu_custom_call.1} parent=1 // pred_region
      _
    $region25: #{tpu_custom_call.1} parent=1 // pred_fallthru
      _
    // Predicated region
    $region26: #{tpu_custom_call.1} parent=1 // pred_check
      _
    $region27: #{tpu_custom_call.1} parent=1 // pred_check_branch
      %79 = sbr.rel (0) target = $region29
    $region28: #{tpu_custom_call.1} parent=1 // pred_region
      _
    $region29: #{tpu_custom_call.1} parent=1 // pred_fallthru
      _
    // Predicated region
    $region30: #{tpu_custom_call.1} parent=1 // pred_check
      _
    $region31: #{tpu_custom_call.1} parent=1 // pred_check_branch
      %81 = sbr.rel (0) target = $region33
    $region32: #{tpu_custom_call.1} parent=1 // pred_region
      %82 = dma.done [#allocation3], 512
    $region33: #{tpu_custom_call.1} parent=1 // pred_fallthru
      _
    // Predicated region
    $region34: #{tpu_custom_call.1} parent=1 // pred_check
      _
    $region35: #{tpu_custom_call.1} parent=1 // pred_check_branch
      %84 = sbr.rel (0) target = $region37
    $region36: #{tpu_custom_call.1} parent=1 // pred_region
      %85 = dma.done [#allocation6], 3072
    $region37: #{tpu_custom_call.1} parent=1 // pred_fallthru
      _
    // Predicated region
    $region38: #{tpu_custom_call.1} parent=1 // pred_check
      _
    $region39: #{tpu_custom_call.1} parent=1 // pred_check_branch
      %87 = sbr.rel (0) target = $region41
    $region40: #{tpu_custom_call.1} parent=1 // pred_region
      %88 = dma.done [#allocation6], 1024
    $region41: #{tpu_custom_call.1} parent=1 // pred_fallthru
      _
    // Predicated region
    $region42: #{tpu_custom_call.1} parent=1 // pred_check
      _
    $region43: #{tpu_custom_call.1} parent=1 // pred_check_branch
      %90 = sbr.rel (0) target = $region45
    $region44: #{tpu_custom_call.1} parent=1 // pred_region
      %91 = dma.done [#allocation9], 4096
    $region45: #{tpu_custom_call.1} parent=1 // pred_fallthru
      _
    // Predicated region
    $region46: #{tpu_custom_call.1} parent=1 // pred_check
      _
    $region47: #{tpu_custom_call.1} parent=1 // pred_check_branch
      %93 = sbr.rel (0) target = $region49
    $region48: #{tpu_custom_call.1} parent=1 // pred_region
      %94 = dma.done [#allocation9], 4096
    $region49: #{tpu_custom_call.1} parent=1 // pred_fallthru
      _
    %v96 = vld [vmem:[%s5] sm:$0x3f]
    %v97 = vld [vmem:[#allocation2] sm:$0xff]
    %v98 = vld [vmem:[#allocation2 + $0x8] sm:$0xff]
    %v99 = vld [vmem:[#allocation2 + $0x10] sm:$0xff]
    %v100 = vld [vmem:[#allocation2 + $0x18] sm:$0xff]
    %101 = vadd.xlane.f32.xlu0 %v97
    %v102 = vpop.xlane.xlu0 %101
    %103 = vadd.xlane.f32.xlu0 %v98
    %v104 = vpop.xlane.xlu0 %103
    %105 = vadd.xlane.f32.xlu0 %v99
    %v106 = vpop.xlane.xlu0 %105
    %107 = vadd.xlane.f32.xlu0 %v100
    %v108 = vpop.xlane.xlu0 %107
    %v109 = vrcp.pop 128.0
    %v110 = vmul.f32 %v102, %v109
    %v111 = vmul.f32 %v104, %v109
    %v112 = vmul.f32 %v106, %v109
    %v113 = vmul.f32 %v108, %v109
    %v114 = vsub.f32 %v97, %v110
    %v115 = vsub.f32 %v98, %v111
    %v116 = vsub.f32 %v99, %v112
    %v117 = vsub.f32 %v100, %v113
    %v118 = vmul.f32 %v114, %v114
    %v119 = vmul.f32 %v115, %v115
    %v120 = vmul.f32 %v116, %v116
    %v121 = vmul.f32 %v117, %v117
    %122 = vadd.xlane.f32.xlu0 %v118
    %v123 = vpop.xlane.xlu0 %122
    %124 = vadd.xlane.f32.xlu0 %v119
    %v125 = vpop.xlane.xlu0 %124
    %126 = vadd.xlane.f32.xlu0 %v120
    %v127 = vpop.xlane.xlu0 %126
    %128 = vadd.xlane.f32.xlu0 %v121
    %v129 = vpop.xlane.xlu0 %128
    %v130 = vmul.f32 %v123, %v109
    %v131 = vmul.f32 %v125, %v109
    %v132 = vmul.f32 %v127, %v109
    %v133 = vmul.f32 %v129, %v109
    %v134 = vadd.f32 %v130, 1e-05
    %v135 = vadd.f32 %v131, 1e-05
    %v136 = vadd.f32 %v132, 1e-05
    %v137 = vadd.f32 %v133, 1e-05
    %v138 = vrsqrt.pop %v134
    %v139 = vrsqrt.pop %v135
    %v140 = vrsqrt.pop %v136
    %v141 = vrsqrt.pop %v137
    %v142 = vmul.f32 %v114, %v138
    %v143 = vmul.f32 %v115, %v139
    %v144 = vmul.f32 %v116, %v140
    %v145 = vmul.f32 %v117, %v141
    %v146 = vlaneseq
    %v147 = vshrl.u32 %v146, 7
    %v148 = vsub.s32 0, %v147
    %v149 = vrot.slane %v96, %v148
    %v150 = vmul.f32 %v142, %v149
    %v151 = vmul.f32 %v143, %v149
    %v152 = vmul.f32 %v144, %v149
    %v153 = vmul.f32 %v145, %v149
    %v154 = vlaneseq
    %v155 = vshrl.u32 %v154, 7
    %v156 = vsub.s32 1, %v155
    %v157 = vrot.slane %v96, %v156
    %v158 = vadd.f32 %v150, %v157
    %v159 = vadd.f32 %v151, %v157
    %v160 = vadd.f32 %v152, %v157
    %v161 = vadd.f32 %v153, %v157
    %v162 = vpack.c.bf16 %v159, %v158
    %v163 = vpack.c.bf16 %v161, %v160
    %v164 = vld [vmem:[#allocation5] sm:$0xff]
    %v165 = vld [vmem:[#allocation5 + $0x8] sm:$0xf]
    %v166 = vld [vmem:[#allocation5 + $0xc] sm:$0xff]
    %v167 = vld [vmem:[#allocation5 + $0x14] sm:$0xf]
    %v168 = vld [vmem:[#allocation5 + $0x18] sm:$0xff]
    %v169 = vld [vmem:[#allocation5 + $0x20] sm:$0xf]
    %v170 = vld [vmem:[#allocation5 + $0x24] sm:$0xff]
    %v171 = vld [vmem:[#allocation5 + $0x2c] sm:$0xf]
    %v172 = vld [vmem:[#allocation5 + $0x30] sm:$0xff]
    %v173 = vld [vmem:[#allocation5 + $0x38] sm:$0xf]
    %v174 = vld [vmem:[#allocation5 + $0x3c] sm:$0xff]
    %v175 = vld [vmem:[#allocation5 + $0x44] sm:$0xf]
    %v176 = vld [vmem:[#allocation5 + $0x48] sm:$0xff]
    %v177 = vld [vmem:[#allocation5 + $0x50] sm:$0xf]
    %v178 = vld [vmem:[#allocation5 + $0x54] sm:$0xff]
    %v179 = vld [vmem:[#allocation5 + $0x5c] sm:$0xf]
    %v180 = vld [vmem:[#allocation5 + $0x60] sm:$0xff]
    %v181 = vld [vmem:[#allocation5 + $0x68] sm:$0xf]
    %v182 = vld [vmem:[#allocation5 + $0x6c] sm:$0xff]
    %v183 = vld [vmem:[#allocation5 + $0x74] sm:$0xf]
    %v184 = vld [vmem:[#allocation5 + $0x78] sm:$0xff]
    %v185 = vld [vmem:[#allocation5 + $0x80] sm:$0xf]
    %v186 = vld [vmem:[#allocation5 + $0x84] sm:$0xff]
    %v187 = vld [vmem:[#allocation5 + $0x8c] sm:$0xf]
    %v188 = vld [vmem:[#allocation5 + $0x90] sm:$0xff]
    %v189 = vld [vmem:[#allocation5 + $0x98] sm:$0xf]
    %v190 = vld [vmem:[#allocation5 + $0x9c] sm:$0xff]
    %v191 = vld [vmem:[#allocation5 + $0xa4] sm:$0xf]
    %v192 = vld [vmem:[#allocation5 + $0xa8] sm:$0xff]
    %v193 = vld [vmem:[#allocation5 + $0xb0] sm:$0xf]
    %v194 = vld [vmem:[#allocation5 + $0xb4] sm:$0xff]
    %v195 = vld [vmem:[#allocation5 + $0xbc] sm:$0xf]
    %v228 = vunpack.c.l.b16 %v164
    %v229 = vunpack.c.h.b16 %v164
    %v230 = vunpack.c.l.b16 %v165
    %v231 = vunpack.c.l.b16 %v166
    %v232 = vunpack.c.h.b16 %v166
    %v233 = vunpack.c.l.b16 %v167
    %v234 = vunpack.c.l.b16 %v168
    %v235 = vunpack.c.h.b16 %v168
    %v236 = vunpack.c.l.b16 %v169
    %v237 = vunpack.c.l.b16 %v170
    %v238 = vunpack.c.h.b16 %v170
    %v239 = vunpack.c.l.b16 %v171
    %v240 = vunpack.c.l.b16 %v172
    %v241 = vunpack.c.h.b16 %v172
    %v242 = vunpack.c.l.b16 %v173
    %v243 = vunpack.c.l.b16 %v174
    %v244 = vunpack.c.h.b16 %v174
    %v245 = vunpack.c.l.b16 %v175
    %v246 = vunpack.c.l.b16 %v176
    %v247 = vunpack.c.h.b16 %v176
    %v248 = vunpack.c.l.b16 %v177
    %v249 = vunpack.c.l.b16 %v178
    %v250 = vunpack.c.h.b16 %v178
    %v251 = vunpack.c.l.b16 %v179
    %v252 = vunpack.c.l.b16 %v180
    %v253 = vunpack.c.h.b16 %v180
    %v254 = vunpack.c.l.b16 %v181
    %v255 = vunpack.c.l.b16 %v182
    %v256 = vunpack.c.h.b16 %v182
    %v257 = vunpack.c.l.b16 %v183
    %v258 = vunpack.c.l.b16 %v184
    %v259 = vunpack.c.h.b16 %v184
    %v260 = vunpack.c.l.b16 %v185
    %v261 = vunpack.c.l.b16 %v186
    %v262 = vunpack.c.h.b16 %v186
    %v263 = vunpack.c.l.b16 %v187
    %v264 = vunpack.c.l.b16 %v188
    %v265 = vunpack.c.h.b16 %v188
    %v266 = vunpack.c.l.b16 %v189
    %v267 = vunpack.c.l.b16 %v190
    %v268 = vunpack.c.h.b16 %v190
    %v269 = vunpack.c.l.b16 %v191
    %v270 = vunpack.c.l.b16 %v192
    %v271 = vunpack.c.h.b16 %v192
    %v272 = vunpack.c.l.b16 %v193
    %v273 = vunpack.c.l.b16 %v194
    %v274 = vunpack.c.h.b16 %v194
    %v275 = vunpack.c.l.b16 %v195
    %v276 = vpack.c.b16 %v231, %v228
    %v277 = vpack.c.b16 %v232, %v229
    %v278 = vpack.c.b16 %v233, %v230
    %v279 = vpack.c.b16 %v237, %v234
    %v280 = vpack.c.b16 %v238, %v235
    %v281 = vpack.c.b16 %v239, %v236
    %v282 = vpack.c.b16 %v243, %v240
    %v283 = vpack.c.b16 %v244, %v241
    %v284 = vpack.c.b16 %v245, %v242
    %v285 = vpack.c.b16 %v249, %v246
    %v286 = vpack.c.b16 %v250, %v247
    %v287 = vpack.c.b16 %v251, %v248
    %v288 = vpack.c.b16 %v255, %v252
    %v289 = vpack.c.b16 %v256, %v253
    %v290 = vpack.c.b16 %v257, %v254
    %v291 = vpack.c.b16 %v261, %v258
    %v292 = vpack.c.b16 %v262, %v259
    %v293 = vpack.c.b16 %v263, %v260
    %v294 = vpack.c.b16 %v267, %v264
    %v295 = vpack.c.b16 %v268, %v265
    %v296 = vpack.c.b16 %v269, %v266
    %v297 = vpack.c.b16 %v273, %v270
    %v298 = vpack.c.b16 %v274, %v271
    %v299 = vpack.c.b16 %v275, %v272
    %324 = vmatprep.subr.bf16.mxu0 %v277
    %325 = vmatpush1.bf16.msra.mxu0 %v276
    %326 = vmatprep.subr.bf16.mxu0 %v280
    %327 = vmatpush1.bf16.msra.mxu0 %v279
    %328 = vmatprep.subr.bf16.mxu0 %v283
    %329 = vmatpush1.bf16.msra.mxu0 %v282
    %330 = vmatprep.subr.bf16.mxu0 %v286
    %331 = vmatpush1.bf16.msra.mxu0 %v285
    %332 = vmatprep.subr.bf16.mxu0 %v289
    %333 = vmatpush1.bf16.msra.mxu0 %v288
    %334 = vmatprep.subr.bf16.mxu0 %v292
    %335 = vmatpush1.bf16.msra.mxu0 %v291
    %336 = vmatprep.subr.bf16.mxu0 %v295
    %337 = vmatpush1.bf16.msra.mxu0 %v294
    %338 = vmatprep.subr.bf16.mxu0 %v298
    %339 = vmatpush1.bf16.msra.mxu0 %v297
    %340 = vmatprep.subr.bf16.mxu0 0
    %341 = vmatpush1.bf16.msra.mxu0 0
    %342 = vmatprep.subr.bf16.mxu0 0
    %343 = vmatpush1.bf16.msra.mxu0 0
    %344 = vmatprep.subr.bf16.mxu0 0
    %345 = vmatpush1.bf16.msra.mxu0 0
    %346 = vmatprep.subr.bf16.mxu0 0
    %347 = vmatpush1.bf16.msra.mxu0 0
    %348 = vmatprep.subr.bf16.mxu0 0
    %349 = vmatpush1.bf16.msra.mxu0 0
    %350 = vmatprep.subr.bf16.mxu0 0
    %351 = vmatpush1.bf16.msra.mxu0 0
    %352 = vmatprep.subr.bf16.mxu0 0
    %353 = vmatpush1.bf16.msra.mxu0 0
    %354 = vmatprep.subr.bf16.mxu0 0
    %355 = vmatpush1.bf16.msra.mxu0 0
    %356 = vmatprep.mubr.bf16.mxu0 0
    %357 = vmatmul.mubr.bf16.gmra.mrb[0].mxu0 %v162
    %v358 = vpop.f32.mrb[0].mxu0
    %v359 = vadd.f32 0.0, %v358
    %v360 = vpop.f32.mrb[0].mxu0
    %v361 = vadd.f32 0.0, %v360
    %v362 = vpop.f32.mrb[0].mxu0
    %v363 = vadd.f32 0.0, %v362
    %v364 = vpop.f32.mrb[0].mxu0
    %v365 = vadd.f32 0.0, %v364
    %366 = vmatprep.mubr.bf16.mxu0 0
    %367 = vmatmul.mubr.bf16.gmra.mrb[0].mxu0 %v163
    %v368 = vpop.f32.mrb[0].mxu0
    %v369 = vadd.f32 0.0, %v368
    %v370 = vpop.f32.mrb[0].mxu0
    %v371 = vadd.f32 0.0, %v370
    %v372 = vpop.f32.mrb[0].mxu0
    %v373 = vadd.f32 0.0, %v372
    %v374 = vpop.f32.mrb[0].mxu0
    %v375 = vadd.f32 0.0, %v374
    %376 = vdwg.mxu0
    %377 = vmatprep.subr.bf16.mxu0 0
    %378 = vmatpush1.bf16.msra.mxu0 %v278
    %379 = vmatprep.subr.bf16.mxu0 0
    %380 = vmatpush1.bf16.msra.mxu0 %v281
    %381 = vmatprep.subr.bf16.mxu0 0
    %382 = vmatpush1.bf16.msra.mxu0 %v284
    %383 = vmatprep.subr.bf16.mxu0 0
    %384 = vmatpush1.bf16.msra.mxu0 %v287
    %385 = vmatprep.subr.bf16.mxu0 0
    %386 = vmatpush1.bf16.msra.mxu0 %v290
    %387 = vmatprep.subr.bf16.mxu0 0
    %388 = vmatpush1.bf16.msra.mxu0 %v293
    %389 = vmatprep.subr.bf16.mxu0 0
    %390 = vmatpush1.bf16.msra.mxu0 %v296
    %391 = vmatprep.subr.bf16.mxu0 0
    %392 = vmatpush1.bf16.msra.mxu0 %v299
    %393 = vmatprep.subr.bf16.mxu0 0
    %394 = vmatpush1.bf16.msra.mxu0 0
    %395 = vmatprep.subr.bf16.mxu0 0
    %396 = vmatpush1.bf16.msra.mxu0 0
    %397 = vmatprep.subr.bf16.mxu0 0
    %398 = vmatpush1.bf16.msra.mxu0 0
    %399 = vmatprep.subr.bf16.mxu0 0
    %400 = vmatpush1.bf16.msra.mxu0 0
    %401 = vmatprep.subr.bf16.mxu0 0
    %402 = vmatpush1.bf16.msra.mxu0 0
    %403 = vmatprep.subr.bf16.mxu0 0
    %404 = vmatpush1.bf16.msra.mxu0 0
    %405 = vmatprep.subr.bf16.mxu0 0
    %406 = vmatpush1.bf16.msra.mxu0 0
    %407 = vmatprep.subr.bf16.mxu0 0
    %408 = vmatpush1.bf16.msra.mxu0 0
    %409 = vmatprep.mubr.bf16.mxu0 0
    %410 = vmatmul.mubr.bf16.gmra.mrb[0].mxu0 %v162
    %v411 = vpop.f32.mrb[0].mxu0
    %v412 = vadd.f32 0.0, %v411
    %v413 = vpop.f32.mrb[0].mxu0
    %v414 = vpop.f32.mrb[0].mxu0
    %v415 = vadd.f32 0.0, %v414
    %v416 = vpop.f32.mrb[0].mxu0
    %417 = vmatprep.mubr.bf16.mxu0 0
    %418 = vmatmul.mubr.bf16.gmra.mrb[0].mxu0 %v163
    %v419 = vpop.f32.mrb[0].mxu0
    %v420 = vadd.f32 0.0, %v419
    %v421 = vpop.f32.mrb[0].mxu0
    %v422 = vpop.f32.mrb[0].mxu0
    %v423 = vadd.f32 0.0, %v422
    %v424 = vpop.f32.mrb[0].mxu0
    %425 = vdwg.mxu0
    %v426 = vlaneseq
    %v427 = vshrl.u32 %v426, 7
    %v428 = vadd.s32 %v427, 8
    %v429 = vlaneseq
    %v430 = vand.u32 %v429, 127
    %vm431 = vcmp.le.s32.totalorder %v430, %v427
    %vm432 = vcmp.le.s32.totalorder %v430, %v428
    %v433 = vpack.c.bf16 %v363, %v359
    %v434 = vpack.c.bf16 %v365, %v361
    %v435 = vpack.c.bf16 %v415, %v412
    %vm436 = vcmask 261120
    %v438 = vsel %vm436, %v433, 0
    %v441 = vsel %vm436, %v434, 0
    %443 = vmatprep.subr.bf16.mxu0 0
    %444 = vmatpush1.bf16.xpose.msra.mxu0 %v441
    %445 = vmatprep.subr.bf16.mxu0 0
    %446 = vmatpush1.bf16.xpose.msra.mxu0 0
    %447 = vmatprep.subr.bf16.mxu0 0
    %448 = vmatpush1.bf16.xpose.msra.mxu0 0
    %449 = vmatprep.subr.bf16.mxu0 0
    %450 = vmatpush1.bf16.xpose.msra.mxu0 0
    %451 = vmatprep.subr.bf16.mxu0 0
    %452 = vmatpush1.bf16.xpose.msra.mxu0 0
    %453 = vmatprep.subr.bf16.mxu0 0
    %454 = vmatpush1.bf16.xpose.msra.mxu0 0
    %455 = vmatprep.subr.bf16.mxu0 0
    %456 = vmatpush1.bf16.xpose.msra.mxu0 0
    %457 = vmatprep.subr.bf16.mxu0 0
    %458 = vmatpush1.bf16.xpose.msra.mxu0 0
    %459 = vmatprep.subr.bf16.mxu0 0
    %460 = vmatpush1.bf16.xpose.msra.mxu0 0
    %461 = vmatprep.subr.bf16.mxu0 0
    %462 = vmatpush1.bf16.xpose.msra.mxu0 0
    %463 = vmatprep.subr.bf16.mxu0 0
    %464 = vmatpush1.bf16.xpose.msra.mxu0 0
    %465 = vmatprep.subr.bf16.mxu0 0
    %466 = vmatpush1.bf16.xpose.msra.mxu0 0
    %467 = vmatprep.subr.bf16.mxu0 0
    %468 = vmatpush1.bf16.xpose.msra.mxu0 0
    %469 = vmatprep.subr.bf16.mxu0 0
    %470 = vmatpush1.bf16.xpose.msra.mxu0 0
    %471 = vmatprep.subr.bf16.mxu0 0
    %472 = vmatpush1.bf16.xpose.msra.mxu0 0
    %473 = vmatprep.subr.bf16.mxu0 0
    %474 = vmatpush1.bf16.xpose.msra.mxu0 0
    %475 = vmatprep.mubr.bf16.mxu0 0
    %476 = vmatmul.mubr.bf16.gmra.mrb[0].mxu0 %v438
    %v477 = vpop.f32.mrb[0].mxu0
    %v478 = vadd.f32 0.0, %v477
    %v479 = vpop.f32.mrb[0].mxu0
    %v480 = vpop.f32.mrb[0].mxu0
    %v481 = vadd.f32 0.0, %v480
    %v482 = vpop.f32.mrb[0].mxu0
    %483 = vdwg.mxu0
    %v484 = vsel %vm431, %v478, -1e+30
    %v485 = vsel %vm432, %v481, -1e+30
    %vm486 = vcmask 130048
    %v487 = vsel %vm486, %v484, -inf
    %488 = vmax.xlane.f32.xlu0 %v487
    %v489 = vpop.xlane.xlu0 %488
    %v490 = vsel %vm486, %v485, -inf
    %491 = vmax.xlane.f32.xlu0 %v490
    %v492 = vpop.xlane.xlu0 %491
    %v493 = vsub.f32 %v484, %v489
    %v494 = vsub.f32 %v485, %v492
    %v495 = vmul.f32 %v493, 1.442695
    %v496 = vpow.pop %v495
    %v497 = vmul.f32 %v494, 1.442695
    %v498 = vpow.pop %v497
    %v499 = vsel %vm486, %v496, 0.0
    %500 = vadd.xlane.f32.xlu0 %v499
    %v501 = vpop.xlane.xlu0 %500
    %v502 = vsel %vm486, %v498, 0.0
    %503 = vadd.xlane.f32.xlu0 %v502
    %v504 = vpop.xlane.xlu0 %503
    %v505 = vrcp.pop %v501
    %v506 = vrcp.pop %v504
    %v507 = vmul.f32 %v496, %v505
    %v508 = vmul.f32 %v498, %v506
    %v509 = vpack.c.bf16 %v508, %v507
    %v511 = vsel %vm486, %v509, 0
    %513 = vmatprep.subr.bf16.mxu0 0
    %514 = vmatpush1.bf16.msra.mxu0 %v435
    %515 = vmatprep.subr.bf16.mxu0 0
    %516 = vmatpush1.bf16.msra.mxu0 0
    %517 = vmatprep.subr.bf16.mxu0 0
    %518 = vmatpush1.bf16.msra.mxu0 0
    %519 = vmatprep.subr.bf16.mxu0 0
    %520 = vmatpush1.bf16.msra.mxu0 0
    %521 = vmatprep.subr.bf16.mxu0 0
    %522 = vmatpush1.bf16.msra.mxu0 0
    %523 = vmatprep.subr.bf16.mxu0 0
    %524 = vmatpush1.bf16.msra.mxu0 0
    %525 = vmatprep.subr.bf16.mxu0 0
    %526 = vmatpush1.bf16.msra.mxu0 0
    %527 = vmatprep.subr.bf16.mxu0 0
    %528 = vmatpush1.bf16.msra.mxu0 0
    %529 = vmatprep.subr.bf16.mxu0 0
    %530 = vmatpush1.bf16.msra.mxu0 0
    %531 = vmatprep.subr.bf16.mxu0 0
    %532 = vmatpush1.bf16.msra.mxu0 0
    %533 = vmatprep.subr.bf16.mxu0 0
    %534 = vmatpush1.bf16.msra.mxu0 0
    %535 = vmatprep.subr.bf16.mxu0 0
    %536 = vmatpush1.bf16.msra.mxu0 0
    %537 = vmatprep.subr.bf16.mxu0 0
    %538 = vmatpush1.bf16.msra.mxu0 0
    %539 = vmatprep.subr.bf16.mxu0 0
    %540 = vmatpush1.bf16.msra.mxu0 0
    %541 = vmatprep.subr.bf16.mxu0 0
    %542 = vmatpush1.bf16.msra.mxu0 0
    %543 = vmatprep.subr.bf16.mxu0 0
    %544 = vmatpush1.bf16.msra.mxu0 0
    %545 = vmatprep.mubr.bf16.mxu0 0
    %546 = vmatmul.mubr.bf16.gmra.mrb[0].mxu0 %v511
    %v547 = vpop.f32.mrb[0].mxu0
    %v548 = vadd.f32 0.0, %v547
    %v549 = vpop.f32.mrb[0].mxu0
    %v550 = vpop.f32.mrb[0].mxu0
    %v551 = vadd.f32 0.0, %v550
    %v552 = vpop.f32.mrb[0].mxu0
    %553 = vdwg.mxu0
    %555 = vrot.lane.b32.xlu0 %v433, 96
    %v556 = vpop.permute.xlu0 %555
    %558 = vrot.lane.b32.xlu0 %v434, 96
    %v559 = vpop.permute.xlu0 %558
    %v561 = vsel %vm436, %v556, 0
    %v564 = vsel %vm436, %v559, 0
    %566 = vmatprep.subr.bf16.mxu0 0
    %567 = vmatpush1.bf16.xpose.msra.mxu0 %v564
    %568 = vmatprep.subr.bf16.mxu0 0
    %569 = vmatpush1.bf16.xpose.msra.mxu0 0
    %570 = vmatprep.subr.bf16.mxu0 0
    %571 = vmatpush1.bf16.xpose.msra.mxu0 0
    %572 = vmatprep.subr.bf16.mxu0 0
    %573 = vmatpush1.bf16.xpose.msra.mxu0 0
    %574 = vmatprep.subr.bf16.mxu0 0
    %575 = vmatpush1.bf16.xpose.msra.mxu0 0
    %576 = vmatprep.subr.bf16.mxu0 0
    %577 = vmatpush1.bf16.xpose.msra.mxu0 0
    %578 = vmatprep.subr.bf16.mxu0 0
    %579 = vmatpush1.bf16.xpose.msra.mxu0 0
    %580 = vmatprep.subr.bf16.mxu0 0
    %581 = vmatpush1.bf16.xpose.msra.mxu0 0
    %582 = vmatprep.subr.bf16.mxu0 0
    %583 = vmatpush1.bf16.xpose.msra.mxu0 0
    %584 = vmatprep.subr.bf16.mxu0 0
    %585 = vmatpush1.bf16.xpose.msra.mxu0 0
    %586 = vmatprep.subr.bf16.mxu0 0
    %587 = vmatpush1.bf16.xpose.msra.mxu0 0
    %588 = vmatprep.subr.bf16.mxu0 0
    %589 = vmatpush1.bf16.xpose.msra.mxu0 0
    %590 = vmatprep.subr.bf16.mxu0 0
    %591 = vmatpush1.bf16.xpose.msra.mxu0 0
    %592 = vmatprep.subr.bf16.mxu0 0
    %593 = vmatpush1.bf16.xpose.msra.mxu0 0
    %594 = vmatprep.subr.bf16.mxu0 0
    %595 = vmatpush1.bf16.xpose.msra.mxu0 0
    %596 = vmatprep.subr.bf16.mxu0 0
    %597 = vmatpush1.bf16.xpose.msra.mxu0 0
    %598 = vmatprep.mubr.bf16.mxu0 0
    %599 = vmatmul.mubr.bf16.gmra.mrb[0].mxu0 %v561
    %v600 = vpop.f32.mrb[0].mxu0
    %v601 = vadd.f32 0.0, %v600
    %v602 = vpop.f32.mrb[0].mxu0
    %v603 = vpop.f32.mrb[0].mxu0
    %v604 = vadd.f32 0.0, %v603
    %v605 = vpop.f32.mrb[0].mxu0
    %606 = vdwg.mxu0
    %v607 = vsel %vm431, %v601, -1e+30
    %v608 = vsel %vm432, %v604, -1e+30
    %v609 = vsel %vm486, %v607, -inf
    %610 = vmax.xlane.f32.xlu0 %v609
    %v611 = vpop.xlane.xlu0 %610
    %v612 = vsel %vm486, %v608, -inf
    %613 = vmax.xlane.f32.xlu0 %v612
    %v614 = vpop.xlane.xlu0 %613
    %v615 = vsub.f32 %v607, %v611
    %v616 = vsub.f32 %v608, %v614
    %v617 = vmul.f32 %v615, 1.442695
    %v618 = vpow.pop %v617
    %v619 = vmul.f32 %v616, 1.442695
    %v620 = vpow.pop %v619
    %v621 = vsel %vm486, %v618, 0.0
    %622 = vadd.xlane.f32.xlu0 %v621
    %v623 = vpop.xlane.xlu0 %622
    %v624 = vsel %vm486, %v620, 0.0
    %625 = vadd.xlane.f32.xlu0 %v624
    %v626 = vpop.xlane.xlu0 %625
    %v627 = vrcp.pop %v623
    %v628 = vrcp.pop %v626
    %v629 = vmul.f32 %v618, %v627
    %v630 = vmul.f32 %v620, %v628
    %v631 = vpack.c.bf16 %v630, %v629
    %633 = vrot.lane.b32.xlu0 %v435, 96
    %v634 = vpop.permute.xlu0 %633
    %v637 = vsel %vm486, %v631, 0
    %639 = vmatprep.subr.bf16.mxu0 0
    %640 = vmatpush1.bf16.msra.mxu0 %v634
    %641 = vmatprep.subr.bf16.mxu0 0
    %642 = vmatpush1.bf16.msra.mxu0 0
    %643 = vmatprep.subr.bf16.mxu0 0
    %644 = vmatpush1.bf16.msra.mxu0 0
    %645 = vmatprep.subr.bf16.mxu0 0
    %646 = vmatpush1.bf16.msra.mxu0 0
    %647 = vmatprep.subr.bf16.mxu0 0
    %648 = vmatpush1.bf16.msra.mxu0 0
    %649 = vmatprep.subr.bf16.mxu0 0
    %650 = vmatpush1.bf16.msra.mxu0 0
    %651 = vmatprep.subr.bf16.mxu0 0
    %652 = vmatpush1.bf16.msra.mxu0 0
    %653 = vmatprep.subr.bf16.mxu0 0
    %654 = vmatpush1.bf16.msra.mxu0 0
    %655 = vmatprep.subr.bf16.mxu0 0
    %656 = vmatpush1.bf16.msra.mxu0 0
    %657 = vmatprep.subr.bf16.mxu0 0
    %658 = vmatpush1.bf16.msra.mxu0 0
    %659 = vmatprep.subr.bf16.mxu0 0
    %660 = vmatpush1.bf16.msra.mxu0 0
    %661 = vmatprep.subr.bf16.mxu0 0
    %662 = vmatpush1.bf16.msra.mxu0 0
    %663 = vmatprep.subr.bf16.mxu0 0
    %664 = vmatpush1.bf16.msra.mxu0 0
    %665 = vmatprep.subr.bf16.mxu0 0
    %666 = vmatpush1.bf16.msra.mxu0 0
    %667 = vmatprep.subr.bf16.mxu0 0
    %668 = vmatpush1.bf16.msra.mxu0 0
    %669 = vmatprep.subr.bf16.mxu0 0
    %670 = vmatpush1.bf16.msra.mxu0 0
    %671 = vmatprep.mubr.bf16.mxu0 0
    %672 = vmatmul.mubr.bf16.gmra.mrb[0].mxu0 %v637
    %v673 = vpop.f32.mrb[0].mxu0
    %v674 = vadd.f32 0.0, %v673
    %v675 = vpop.f32.mrb[0].mxu0
    %v676 = vpop.f32.mrb[0].mxu0
    %v677 = vadd.f32 0.0, %v676
    %v678 = vpop.f32.mrb[0].mxu0
    %679 = vdwg.mxu0
    %680 = vrot.lane.b32.xlu0 %v433, 64
    %v681 = vpop.permute.xlu0 %680
    %682 = vrot.lane.b32.xlu0 %v434, 64
    %v683 = vpop.permute.xlu0 %682
    %v685 = vsel %vm436, %v681, 0
    %v688 = vsel %vm436, %v683, 0
    %690 = vmatprep.subr.bf16.mxu0 0
    %691 = vmatpush1.bf16.xpose.msra.mxu0 %v688
    %692 = vmatprep.subr.bf16.mxu0 0
    %693 = vmatpush1.bf16.xpose.msra.mxu0 0
    %694 = vmatprep.subr.bf16.mxu0 0
    %695 = vmatpush1.bf16.xpose.msra.mxu0 0
    %696 = vmatprep.subr.bf16.mxu0 0
    %697 = vmatpush1.bf16.xpose.msra.mxu0 0
    %698 = vmatprep.subr.bf16.mxu0 0
    %699 = vmatpush1.bf16.xpose.msra.mxu0 0
    %700 = vmatprep.subr.bf16.mxu0 0
    %701 = vmatpush1.bf16.xpose.msra.mxu0 0
    %702 = vmatprep.subr.bf16.mxu0 0
    %703 = vmatpush1.bf16.xpose.msra.mxu0 0
    %704 = vmatprep.subr.bf16.mxu0 0
    %705 = vmatpush1.bf16.xpose.msra.mxu0 0
    %706 = vmatprep.subr.bf16.mxu0 0
    %707 = vmatpush1.bf16.xpose.msra.mxu0 0
    %708 = vmatprep.subr.bf16.mxu0 0
    %709 = vmatpush1.bf16.xpose.msra.mxu0 0
    %710 = vmatprep.subr.bf16.mxu0 0
    %711 = vmatpush1.bf16.xpose.msra.mxu0 0
    %712 = vmatprep.subr.bf16.mxu0 0
    %713 = vmatpush1.bf16.xpose.msra.mxu0 0
    %714 = vmatprep.subr.bf16.mxu0 0
    %715 = vmatpush1.bf16.xpose.msra.mxu0 0
    %716 = vmatprep.subr.bf16.mxu0 0
    %717 = vmatpush1.bf16.xpose.msra.mxu0 0
    %718 = vmatprep.subr.bf16.mxu0 0
    %719 = vmatpush1.bf16.xpose.msra.mxu0 0
    %720 = vmatprep.subr.bf16.mxu0 0
    %721 = vmatpush1.bf16.xpose.msra.mxu0 0
    %722 = vmatprep.mubr.bf16.mxu0 0
    %723 = vmatmul.mubr.bf16.gmra.mrb[0].mxu0 %v685
    %v724 = vpop.f32.mrb[0].mxu0
    %v725 = vadd.f32 0.0, %v724
    %v726 = vpop.f32.mrb[0].mxu0
    %v727 = vpop.f32.mrb[0].mxu0
    %v728 = vadd.f32 0.0, %v727
    %v729 = vpop.f32.mrb[0].mxu0
    %730 = vdwg.mxu0
    %v731 = vsel %vm431, %v725, -1e+30
    %v732 = vsel %vm432, %v728, -1e+30
    %v733 = vsel %vm486, %v731, -inf
    %734 = vmax.xlane.f32.xlu0 %v733
    %v735 = vpop.xlane.xlu0 %734
    %v736 = vsel %vm486, %v732, -inf
    %737 = vmax.xlane.f32.xlu0 %v736
    %v738 = vpop.xlane.xlu0 %737
    %v739 = vsub.f32 %v731, %v735
    %v740 = vsub.f32 %v732, %v738
    %v741 = vmul.f32 %v739, 1.442695
    %v742 = vpow.pop %v741
    %v743 = vmul.f32 %v740, 1.442695
    %v744 = vpow.pop %v743
    %v745 = vsel %vm486, %v742, 0.0
    %746 = vadd.xlane.f32.xlu0 %v745
    %v747 = vpop.xlane.xlu0 %746
    %v748 = vsel %vm486, %v744, 0.0
    %749 = vadd.xlane.f32.xlu0 %v748
    %v750 = vpop.xlane.xlu0 %749
    %v751 = vrcp.pop %v747
    %v752 = vrcp.pop %v750
    %v753 = vmul.f32 %v742, %v751
    %v754 = vmul.f32 %v744, %v752
    %v755 = vpack.c.bf16 %v754, %v753
    %756 = vrot.lane.b32.xlu0 %v435, 64
    %v757 = vpop.permute.xlu0 %756
    %v760 = vsel %vm486, %v755, 0
    %762 = vmatprep.subr.bf16.mxu0 0
    %763 = vmatpush1.bf16.msra.mxu0 %v757
    %764 = vmatprep.subr.bf16.mxu0 0
    %765 = vmatpush1.bf16.msra.mxu0 0
    %766 = vmatprep.subr.bf16.mxu0 0
    %767 = vmatpush1.bf16.msra.mxu0 0
    %768 = vmatprep.subr.bf16.mxu0 0
    %769 = vmatpush1.bf16.msra.mxu0 0
    %770 = vmatprep.subr.bf16.mxu0 0
    %771 = vmatpush1.bf16.msra.mxu0 0
    %772 = vmatprep.subr.bf16.mxu0 0
    %773 = vmatpush1.bf16.msra.mxu0 0
    %774 = vmatprep.subr.bf16.mxu0 0
    %775 = vmatpush1.bf16.msra.mxu0 0
    %776 = vmatprep.subr.bf16.mxu0 0
    %777 = vmatpush1.bf16.msra.mxu0 0
    %778 = vmatprep.subr.bf16.mxu0 0
    %779 = vmatpush1.bf16.msra.mxu0 0
    %780 = vmatprep.subr.bf16.mxu0 0
    %781 = vmatpush1.bf16.msra.mxu0 0
    %782 = vmatprep.subr.bf16.mxu0 0
    %783 = vmatpush1.bf16.msra.mxu0 0
    %784 = vmatprep.subr.bf16.mxu0 0
    %785 = vmatpush1.bf16.msra.mxu0 0
    %786 = vmatprep.subr.bf16.mxu0 0
    %787 = vmatpush1.bf16.msra.mxu0 0
    %788 = vmatprep.subr.bf16.mxu0 0
    %789 = vmatpush1.bf16.msra.mxu0 0
    %790 = vmatprep.subr.bf16.mxu0 0
    %791 = vmatpush1.bf16.msra.mxu0 0
    %792 = vmatprep.subr.bf16.mxu0 0
    %793 = vmatpush1.bf16.msra.mxu0 0
    %794 = vmatprep.mubr.bf16.mxu0 0
    %795 = vmatmul.mubr.bf16.gmra.mrb[0].mxu0 %v760
    %v796 = vpop.f32.mrb[0].mxu0
    %v797 = vadd.f32 0.0, %v796
    %v798 = vpop.f32.mrb[0].mxu0
    %v799 = vpop.f32.mrb[0].mxu0
    %v800 = vadd.f32 0.0, %v799
    %v801 = vpop.f32.mrb[0].mxu0
    %802 = vdwg.mxu0
    %803 = vrot.lane.b32.xlu0 %v433, 32
    %v804 = vpop.permute.xlu0 %803
    %805 = vrot.lane.b32.xlu0 %v434, 32
    %v806 = vpop.permute.xlu0 %805
    %v808 = vsel %vm436, %v804, 0
    %v811 = vsel %vm436, %v806, 0
    %813 = vmatprep.subr.bf16.mxu0 0
    %814 = vmatpush1.bf16.xpose.msra.mxu0 %v811
    %815 = vmatprep.subr.bf16.mxu0 0
    %816 = vmatpush1.bf16.xpose.msra.mxu0 0
    %817 = vmatprep.subr.bf16.mxu0 0
    %818 = vmatpush1.bf16.xpose.msra.mxu0 0
    %819 = vmatprep.subr.bf16.mxu0 0
    %820 = vmatpush1.bf16.xpose.msra.mxu0 0
    %821 = vmatprep.subr.bf16.mxu0 0
    %822 = vmatpush1.bf16.xpose.msra.mxu0 0
    %823 = vmatprep.subr.bf16.mxu0 0
    %824 = vmatpush1.bf16.xpose.msra.mxu0 0
    %825 = vmatprep.subr.bf16.mxu0 0
    %826 = vmatpush1.bf16.xpose.msra.mxu0 0
    %827 = vmatprep.subr.bf16.mxu0 0
    %828 = vmatpush1.bf16.xpose.msra.mxu0 0
    %829 = vmatprep.subr.bf16.mxu0 0
    %830 = vmatpush1.bf16.xpose.msra.mxu0 0
    %831 = vmatprep.subr.bf16.mxu0 0
    %832 = vmatpush1.bf16.xpose.msra.mxu0 0
    %833 = vmatprep.subr.bf16.mxu0 0
    %834 = vmatpush1.bf16.xpose.msra.mxu0 0
    %835 = vmatprep.subr.bf16.mxu0 0
    %836 = vmatpush1.bf16.xpose.msra.mxu0 0
    %837 = vmatprep.subr.bf16.mxu0 0
    %838 = vmatpush1.bf16.xpose.msra.mxu0 0
    %839 = vmatprep.subr.bf16.mxu0 0
    %840 = vmatpush1.bf16.xpose.msra.mxu0 0
    %841 = vmatprep.subr.bf16.mxu0 0
    %842 = vmatpush1.bf16.xpose.msra.mxu0 0
    %843 = vmatprep.subr.bf16.mxu0 0
    %844 = vmatpush1.bf16.xpose.msra.mxu0 0
    %845 = vmatprep.mubr.bf16.mxu0 0
    %846 = vmatmul.mubr.bf16.gmra.mrb[0].mxu0 %v808
    %v847 = vpop.f32.mrb[0].mxu0
    %v848 = vadd.f32 0.0, %v847
    %v849 = vpop.f32.mrb[0].mxu0
    %v850 = vpop.f32.mrb[0].mxu0
    %v851 = vadd.f32 0.0, %v850
    %v852 = vpop.f32.mrb[0].mxu0
    %853 = vdwg.mxu0
    %v854 = vsel %vm431, %v848, -1e+30
    %v855 = vsel %vm432, %v851, -1e+30
    %v856 = vsel %vm486, %v854, -inf
    %857 = vmax.xlane.f32.xlu0 %v856
    %v858 = vpop.xlane.xlu0 %857
    %v859 = vsel %vm486, %v855, -inf
    %860 = vmax.xlane.f32.xlu0 %v859
    %v861 = vpop.xlane.xlu0 %860
    %v862 = vsub.f32 %v854, %v858
    %v863 = vsub.f32 %v855, %v861
    %v864 = vmul.f32 %v862, 1.442695
    %v865 = vpow.pop %v864
    %v866 = vmul.f32 %v863, 1.442695
    %v867 = vpow.pop %v866
    %v868 = vsel %vm486, %v865, 0.0
    %869 = vadd.xlane.f32.xlu0 %v868
    %v870 = vpop.xlane.xlu0 %869
    %v871 = vsel %vm486, %v867, 0.0
    %872 = vadd.xlane.f32.xlu0 %v871
    %v873 = vpop.xlane.xlu0 %872
    %v874 = vrcp.pop %v870
    %v875 = vrcp.pop %v873
    %v876 = vmul.f32 %v865, %v874
    %v877 = vmul.f32 %v867, %v875
    %v878 = vpack.c.bf16 %v877, %v876
    %879 = vrot.lane.b32.xlu0 %v435, 32
    %v880 = vpop.permute.xlu0 %879
    %v883 = vsel %vm486, %v878, 0
    %885 = vmatprep.subr.bf16.mxu0 0
    %886 = vmatpush1.bf16.msra.mxu0 %v880
    %887 = vmatprep.subr.bf16.mxu0 0
    %888 = vmatpush1.bf16.msra.mxu0 0
    %889 = vmatprep.subr.bf16.mxu0 0
    %890 = vmatpush1.bf16.msra.mxu0 0
    %891 = vmatprep.subr.bf16.mxu0 0
    %892 = vmatpush1.bf16.msra.mxu0 0
    %893 = vmatprep.subr.bf16.mxu0 0
    %894 = vmatpush1.bf16.msra.mxu0 0
    %895 = vmatprep.subr.bf16.mxu0 0
    %896 = vmatpush1.bf16.msra.mxu0 0
    %897 = vmatprep.subr.bf16.mxu0 0
    %898 = vmatpush1.bf16.msra.mxu0 0
    %899 = vmatprep.subr.bf16.mxu0 0
    %900 = vmatpush1.bf16.msra.mxu0 0
    %901 = vmatprep.subr.bf16.mxu0 0
    %902 = vmatpush1.bf16.msra.mxu0 0
    %903 = vmatprep.subr.bf16.mxu0 0
    %904 = vmatpush1.bf16.msra.mxu0 0
    %905 = vmatprep.subr.bf16.mxu0 0
    %906 = vmatpush1.bf16.msra.mxu0 0
    %907 = vmatprep.subr.bf16.mxu0 0
    %908 = vmatpush1.bf16.msra.mxu0 0
    %909 = vmatprep.subr.bf16.mxu0 0
    %910 = vmatpush1.bf16.msra.mxu0 0
    %911 = vmatprep.subr.bf16.mxu0 0
    %912 = vmatpush1.bf16.msra.mxu0 0
    %913 = vmatprep.subr.bf16.mxu0 0
    %914 = vmatpush1.bf16.msra.mxu0 0
    %915 = vmatprep.subr.bf16.mxu0 0
    %916 = vmatpush1.bf16.msra.mxu0 0
    %917 = vmatprep.mubr.bf16.mxu0 0
    %918 = vmatmul.mubr.bf16.gmra.mrb[0].mxu0 %v883
    %v919 = vpop.f32.mrb[0].mxu0
    %v920 = vadd.f32 0.0, %v919
    %v921 = vpop.f32.mrb[0].mxu0
    %v922 = vpop.f32.mrb[0].mxu0
    %v923 = vadd.f32 0.0, %v922
    %v924 = vpop.f32.mrb[0].mxu0
    %925 = vdwg.mxu0
    %928 = vrot.lane.b32.xlu0 %v674, 32
    %v929 = vpop.permute.xlu0 %928
    %930 = vrot.lane.b32.xlu0 %v677, 32
    %v931 = vpop.permute.xlu0 %930
    %936 = vrot.lane.b32.xlu0 %v797, 64
    %v937 = vpop.permute.xlu0 %936
    %938 = vrot.lane.b32.xlu0 %v800, 64
    %v939 = vpop.permute.xlu0 %938
    %944 = vrot.lane.b32.xlu0 %v920, 96
    %v945 = vpop.permute.xlu0 %944
    %946 = vrot.lane.b32.xlu0 %v923, 96
    %v947 = vpop.permute.xlu0 %946
    %v950 = vsel %vm436, %v548, %v929
    %v951 = vsel %vm436, %v551, %v931
    %vm952 = vcmask 523264
    %v953 = vsel %vm952, %v950, %v937
    %v954 = vsel %vm952, %v951, %v939
    %vm955 = vcmask 785408
    %v956 = vsel %vm955, %v953, %v945
    %v957 = vsel %vm955, %v954, %v947
    %v958 = vpack.c.bf16 %v373, %v369
    %v959 = vpack.c.bf16 %v375, %v371
    %v960 = vpack.c.bf16 %v423, %v420
    %v962 = vsel %vm436, %v958, 0
    %v965 = vsel %vm436, %v959, 0
    %967 = vmatprep.subr.bf16.mxu0 0
    %968 = vmatpush1.bf16.xpose.msra.mxu0 %v965
    %969 = vmatprep.subr.bf16.mxu0 0
    %970 = vmatpush1.bf16.xpose.msra.mxu0 0
    %971 = vmatprep.subr.bf16.mxu0 0
    %972 = vmatpush1.bf16.xpose.msra.mxu0 0
    %973 = vmatprep.subr.bf16.mxu0 0
    %974 = vmatpush1.bf16.xpose.msra.mxu0 0
    %975 = vmatprep.subr.bf16.mxu0 0
    %976 = vmatpush1.bf16.xpose.msra.mxu0 0
    %977 = vmatprep.subr.bf16.mxu0 0
    %978 = vmatpush1.bf16.xpose.msra.mxu0 0
    %979 = vmatprep.subr.bf16.mxu0 0
    %980 = vmatpush1.bf16.xpose.msra.mxu0 0
    %981 = vmatprep.subr.bf16.mxu0 0
    %982 = vmatpush1.bf16.xpose.msra.mxu0 0
    %983 = vmatprep.subr.bf16.mxu0 0
    %984 = vmatpush1.bf16.xpose.msra.mxu0 0
    %985 = vmatprep.subr.bf16.mxu0 0
    %986 = vmatpush1.bf16.xpose.msra.mxu0 0
    %987 = vmatprep.subr.bf16.mxu0 0
    %988 = vmatpush1.bf16.xpose.msra.mxu0 0
    %989 = vmatprep.subr.bf16.mxu0 0
    %990 = vmatpush1.bf16.xpose.msra.mxu0 0
    %991 = vmatprep.subr.bf16.mxu0 0
    %992 = vmatpush1.bf16.xpose.msra.mxu0 0
    %993 = vmatprep.subr.bf16.mxu0 0
    %994 = vmatpush1.bf16.xpose.msra.mxu0 0
    %995 = vmatprep.subr.bf16.mxu0 0
    %996 = vmatpush1.bf16.xpose.msra.mxu0 0
    %997 = vmatprep.subr.bf16.mxu0 0
    %998 = vmatpush1.bf16.xpose.msra.mxu0 0
    %999 = vmatprep.mubr.bf16.mxu0 0
    %1000 = vmatmul.mubr.bf16.gmra.mrb[0].mxu0 %v962
    %v1001 = vpop.f32.mrb[0].mxu0
    %v1002 = vadd.f32 0.0, %v1001
    %v1003 = vpop.f32.mrb[0].mxu0
    %v1004 = vpop.f32.mrb[0].mxu0
    %v1005 = vadd.f32 0.0, %v1004
    %v1006 = vpop.f32.mrb[0].mxu0
    %1007 = vdwg.mxu0
    %v1008 = vsel %vm431, %v1002, -1e+30
    %v1009 = vsel %vm432, %v1005, -1e+30
    %v1010 = vsel %vm486, %v1008, -inf
    %1011 = vmax.xlane.f32.xlu0 %v1010
    %v1012 = vpop.xlane.xlu0 %1011
    %v1013 = vsel %vm486, %v1009, -inf
    %1014 = vmax.xlane.f32.xlu0 %v1013
    %v1015 = vpop.xlane.xlu0 %1014
    %v1016 = vsub.f32 %v1008, %v1012
    %v1017 = vsub.f32 %v1009, %v1015
    %v1018 = vmul.f32 %v1016, 1.442695
    %v1019 = vpow.pop %v1018
    %v1020 = vmul.f32 %v1017, 1.442695
    %v1021 = vpow.pop %v1020
    %v1022 = vsel %vm486, %v1019, 0.0
    %1023 = vadd.xlane.f32.xlu0 %v1022
    %v1024 = vpop.xlane.xlu0 %1023
    %v1025 = vsel %vm486, %v1021, 0.0
    %1026 = vadd.xlane.f32.xlu0 %v1025
    %v1027 = vpop.xlane.xlu0 %1026
    %v1028 = vrcp.pop %v1024
    %v1029 = vrcp.pop %v1027
    %v1030 = vmul.f32 %v1019, %v1028
    %v1031 = vmul.f32 %v1021, %v1029
    %v1032 = vpack.c.bf16 %v1031, %v1030
    %v1034 = vsel %vm486, %v1032, 0
    %1036 = vmatprep.subr.bf16.mxu0 0
    %1037 = vmatpush1.bf16.msra.mxu0 %v960
    %1038 = vmatprep.subr.bf16.mxu0 0
    %1039 = vmatpush1.bf16.msra.mxu0 0
    %1040 = vmatprep.subr.bf16.mxu0 0
    %1041 = vmatpush1.bf16.msra.mxu0 0
    %1042 = vmatprep.subr.bf16.mxu0 0
    %1043 = vmatpush1.bf16.msra.mxu0 0
    %1044 = vmatprep.subr.bf16.mxu0 0
    %1045 = vmatpush1.bf16.msra.mxu0 0
    %1046 = vmatprep.subr.bf16.mxu0 0
    %1047 = vmatpush1.bf16.msra.mxu0 0
    %1048 = vmatprep.subr.bf16.mxu0 0
    %1049 = vmatpush1.bf16.msra.mxu0 0
    %1050 = vmatprep.subr.bf16.mxu0 0
    %1051 = vmatpush1.bf16.msra.mxu0 0
    %1052 = vmatprep.subr.bf16.mxu0 0
    %1053 = vmatpush1.bf16.msra.mxu0 0
    %1054 = vmatprep.subr.bf16.mxu0 0
    %1055 = vmatpush1.bf16.msra.mxu0 0
    %1056 = vmatprep.subr.bf16.mxu0 0
    %1057 = vmatpush1.bf16.msra.mxu0 0
    %1058 = vmatprep.subr.bf16.mxu0 0
    %1059 = vmatpush1.bf16.msra.mxu0 0
    %1060 = vmatprep.subr.bf16.mxu0 0
    %1061 = vmatpush1.bf16.msra.mxu0 0
    %1062 = vmatprep.subr.bf16.mxu0 0
    %1063 = vmatpush1.bf16.msra.mxu0 0
    %1064 = vmatprep.subr.bf16.mxu0 0
    %1065 = vmatpush1.bf16.msra.mxu0 0
    %1066 = vmatprep.subr.bf16.mxu0 0
    %1067 = vmatpush1.bf16.msra.mxu0 0
    %1068 = vmatprep.mubr.bf16.mxu0 0
    %1069 = vmatmul.mubr.bf16.gmra.mrb[0].mxu0 %v1034
    %v1070 = vpop.f32.mrb[0].mxu0
    %v1071 = vadd.f32 0.0, %v1070
    %v1072 = vpop.f32.mrb[0].mxu0
    %v1073 = vpop.f32.mrb[0].mxu0
    %v1074 = vadd.f32 0.0, %v1073
    %v1075 = vpop.f32.mrb[0].mxu0
    %1076 = vdwg.mxu0
    %1078 = vrot.lane.b32.xlu0 %v958, 96
    %v1079 = vpop.permute.xlu0 %1078
    %1081 = vrot.lane.b32.xlu0 %v959, 96
    %v1082 = vpop.permute.xlu0 %1081
    %v1084 = vsel %vm436, %v1079, 0
    %v1087 = vsel %vm436, %v1082, 0
    %1089 = vmatprep.subr.bf16.mxu0 0
    %1090 = vmatpush1.bf16.xpose.msra.mxu0 %v1087
    %1091 = vmatprep.subr.bf16.mxu0 0
    %1092 = vmatpush1.bf16.xpose.msra.mxu0 0
    %1093 = vmatprep.subr.bf16.mxu0 0
    %1094 = vmatpush1.bf16.xpose.msra.mxu0 0
    %1095 = vmatprep.subr.bf16.mxu0 0
    %1096 = vmatpush1.bf16.xpose.msra.mxu0 0
    %1097 = vmatprep.subr.bf16.mxu0 0
    %1098 = vmatpush1.bf16.xpose.msra.mxu0 0
    %1099 = vmatprep.subr.bf16.mxu0 0
    %1100 = vmatpush1.bf16.xpose.msra.mxu0 0
    %1101 = vmatprep.subr.bf16.mxu0 0
    %1102 = vmatpush1.bf16.xpose.msra.mxu0 0
    %1103 = vmatprep.subr.bf16.mxu0 0
    %1104 = vmatpush1.bf16.xpose.msra.mxu0 0
    %1105 = vmatprep.subr.bf16.mxu0 0
    %1106 = vmatpush1.bf16.xpose.msra.mxu0 0
    %1107 = vmatprep.subr.bf16.mxu0 0
    %1108 = vmatpush1.bf16.xpose.msra.mxu0 0
    %1109 = vmatprep.subr.bf16.mxu0 0
    %1110 = vmatpush1.bf16.xpose.msra.mxu0 0
    %1111 = vmatprep.subr.bf16.mxu0 0
    %1112 = vmatpush1.bf16.xpose.msra.mxu0 0
    %1113 = vmatprep.subr.bf16.mxu0 0
    %1114 = vmatpush1.bf16.xpose.msra.mxu0 0
    %1115 = vmatprep.subr.bf16.mxu0 0
    %1116 = vmatpush1.bf16.xpose.msra.mxu0 0
    %1117 = vmatprep.subr.bf16.mxu0 0
    %1118 = vmatpush1.bf16.xpose.msra.mxu0 0
    %1119 = vmatprep.subr.bf16.mxu0 0
    %1120 = vmatpush1.bf16.xpose.msra.mxu0 0
    %1121 = vmatprep.mubr.bf16.mxu0 0
    %1122 = vmatmul.mubr.bf16.gmra.mrb[0].mxu0 %v1084
    %v1123 = vpop.f32.mrb[0].mxu0
    %v1124 = vadd.f32 0.0, %v1123
    %v1125 = vpop.f32.mrb[0].mxu0
    %v1126 = vpop.f32.mrb[0].mxu0
    %v1127 = vadd.f32 0.0, %v1126
    %v1128 = vpop.f32.mrb[0].mxu0
    %1129 = vdwg.mxu0
    %v1130 = vsel %vm431, %v1124, -1e+30
    %v1131 = vsel %vm432, %v1127, -1e+30
    %v1132 = vsel %vm486, %v1130, -inf
    %1133 = vmax.xlane.f32.xlu0 %v1132
    %v1134 = vpop.xlane.xlu0 %1133
    %v1135 = vsel %vm486, %v1131, -inf
    %1136 = vmax.xlane.f32.xlu0 %v1135
    %v1137 = vpop.xlane.xlu0 %1136
    %v1138 = vsub.f32 %v1130, %v1134
    %v1139 = vsub.f32 %v1131, %v1137
    %v1140 = vmul.f32 %v1138, 1.442695
    %v1141 = vpow.pop %v1140
    %v1142 = vmul.f32 %v1139, 1.442695
    %v1143 = vpow.pop %v1142
    %v1144 = vsel %vm486, %v1141, 0.0
    %1145 = vadd.xlane.f32.xlu0 %v1144
    %v1146 = vpop.xlane.xlu0 %1145
    %v1147 = vsel %vm486, %v1143, 0.0
    %1148 = vadd.xlane.f32.xlu0 %v1147
    %v1149 = vpop.xlane.xlu0 %1148
    %v1150 = vrcp.pop %v1146
    %v1151 = vrcp.pop %v1149
    %v1152 = vmul.f32 %v1141, %v1150
    %v1153 = vmul.f32 %v1143, %v1151
    %v1154 = vpack.c.bf16 %v1153, %v1152
    %1156 = vrot.lane.b32.xlu0 %v960, 96
    %v1157 = vpop.permute.xlu0 %1156
    %v1160 = vsel %vm486, %v1154, 0
    %1162 = vmatprep.subr.bf16.mxu0 0
    %1163 = vmatpush1.bf16.msra.mxu0 %v1157
    %1164 = vmatprep.subr.bf16.mxu0 0
    %1165 = vmatpush1.bf16.msra.mxu0 0
    %1166 = vmatprep.subr.bf16.mxu0 0
    %1167 = vmatpush1.bf16.msra.mxu0 0
    %1168 = vmatprep.subr.bf16.mxu0 0
    %1169 = vmatpush1.bf16.msra.mxu0 0
    %1170 = vmatprep.subr.bf16.mxu0 0
    %1171 = vmatpush1.bf16.msra.mxu0 0
    %1172 = vmatprep.subr.bf16.mxu0 0
    %1173 = vmatpush1.bf16.msra.mxu0 0
    %1174 = vmatprep.subr.bf16.mxu0 0
    %1175 = vmatpush1.bf16.msra.mxu0 0
    %1176 = vmatprep.subr.bf16.mxu0 0
    %1177 = vmatpush1.bf16.msra.mxu0 0
    %1178 = vmatprep.subr.bf16.mxu0 0
    %1179 = vmatpush1.bf16.msra.mxu0 0
    %1180 = vmatprep.subr.bf16.mxu0 0
    %1181 = vmatpush1.bf16.msra.mxu0 0
    %1182 = vmatprep.subr.bf16.mxu0 0
    %1183 = vmatpush1.bf16.msra.mxu0 0
    %1184 = vmatprep.subr.bf16.mxu0 0
    %1185 = vmatpush1.bf16.msra.mxu0 0
    %1186 = vmatprep.subr.bf16.mxu0 0
    %1187 = vmatpush1.bf16.msra.mxu0 0
    %1188 = vmatprep.subr.bf16.mxu0 0
    %1189 = vmatpush1.bf16.msra.mxu0 0
    %1190 = vmatprep.subr.bf16.mxu0 0
    %1191 = vmatpush1.bf16.msra.mxu0 0
    %1192 = vmatprep.subr.bf16.mxu0 0
    %1193 = vmatpush1.bf16.msra.mxu0 0
    %1194 = vmatprep.mubr.bf16.mxu0 0
    %1195 = vmatmul.mubr.bf16.gmra.mrb[0].mxu0 %v1160
    %v1196 = vpop.f32.mrb[0].mxu0
    %v1197 = vadd.f32 0.0, %v1196
    %v1198 = vpop.f32.mrb[0].mxu0
    %v1199 = vpop.f32.mrb[0].mxu0
    %v1200 = vadd.f32 0.0, %v1199
    %v1201 = vpop.f32.mrb[0].mxu0
    %1202 = vdwg.mxu0
    %1203 = vrot.lane.b32.xlu0 %v958, 64
    %v1204 = vpop.permute.xlu0 %1203
    %1205 = vrot.lane.b32.xlu0 %v959, 64
    %v1206 = vpop.permute.xlu0 %1205
    %v1208 = vsel %vm436, %v1204, 0
    %v1211 = vsel %vm436, %v1206, 0
    %1213 = vmatprep.subr.bf16.mxu0 0
    %1214 = vmatpush1.bf16.xpose.msra.mxu0 %v1211
    %1215 = vmatprep.subr.bf16.mxu0 0
    %1216 = vmatpush1.bf16.xpose.msra.mxu0 0
    %1217 = vmatprep.subr.bf16.mxu0 0
    %1218 = vmatpush1.bf16.xpose.msra.mxu0 0
    %1219 = vmatprep.subr.bf16.mxu0 0
    %1220 = vmatpush1.bf16.xpose.msra.mxu0 0
    %1221 = vmatprep.subr.bf16.mxu0 0
    %1222 = vmatpush1.bf16.xpose.msra.mxu0 0
    %1223 = vmatprep.subr.bf16.mxu0 0
    %1224 = vmatpush1.bf16.xpose.msra.mxu0 0
    %1225 = vmatprep.subr.bf16.mxu0 0
    %1226 = vmatpush1.bf16.xpose.msra.mxu0 0
    %1227 = vmatprep.subr.bf16.mxu0 0
    %1228 = vmatpush1.bf16.xpose.msra.mxu0 0
    %1229 = vmatprep.subr.bf16.mxu0 0
    %1230 = vmatpush1.bf16.xpose.msra.mxu0 0
    %1231 = vmatprep.subr.bf16.mxu0 0
    %1232 = vmatpush1.bf16.xpose.msra.mxu0 0
    %1233 = vmatprep.subr.bf16.mxu0 0
    %1234 = vmatpush1.bf16.xpose.msra.mxu0 0
    %1235 = vmatprep.subr.bf16.mxu0 0
    %1236 = vmatpush1.bf16.xpose.msra.mxu0 0
    %1237 = vmatprep.subr.bf16.mxu0 0
    %1238 = vmatpush1.bf16.xpose.msra.mxu0 0
    %1239 = vmatprep.subr.bf16.mxu0 0
    %1240 = vmatpush1.bf16.xpose.msra.mxu0 0
    %1241 = vmatprep.subr.bf16.mxu0 0
    %1242 = vmatpush1.bf16.xpose.msra.mxu0 0
    %1243 = vmatprep.subr.bf16.mxu0 0
    %1244 = vmatpush1.bf16.xpose.msra.mxu0 0
    %1245 = vmatprep.mubr.bf16.mxu0 0
    %1246 = vmatmul.mubr.bf16.gmra.mrb[0].mxu0 %v1208
    %v1247 = vpop.f32.mrb[0].mxu0
    %v1248 = vadd.f32 0.0, %v1247
    %v1249 = vpop.f32.mrb[0].mxu0
    %v1250 = vpop.f32.mrb[0].mxu0
    %v1251 = vadd.f32 0.0, %v1250
    %v1252 = vpop.f32.mrb[0].mxu0
    %1253 = vdwg.mxu0
    %v1254 = vsel %vm431, %v1248, -1e+30
    %v1255 = vsel %vm432, %v1251, -1e+30
    %v1256 = vsel %vm486, %v1254, -inf
    %1257 = vmax.xlane.f32.xlu0 %v1256
    %v1258 = vpop.xlane.xlu0 %1257
    %v1259 = vsel %vm486, %v1255, -inf
    %1260 = vmax.xlane.f32.xlu0 %v1259
    %v1261 = vpop.xlane.xlu0 %1260
    %v1262 = vsub.f32 %v1254, %v1258
    %v1263 = vsub.f32 %v1255, %v1261
    %v1264 = vmul.f32 %v1262, 1.442695
    %v1265 = vpow.pop %v1264
    %v1266 = vmul.f32 %v1263, 1.442695
    %v1267 = vpow.pop %v1266
    %v1268 = vsel %vm486, %v1265, 0.0
    %1269 = vadd.xlane.f32.xlu0 %v1268
    %v1270 = vpop.xlane.xlu0 %1269
    %v1271 = vsel %vm486, %v1267, 0.0
    %1272 = vadd.xlane.f32.xlu0 %v1271
    %v1273 = vpop.xlane.xlu0 %1272
    %v1274 = vrcp.pop %v1270
    %v1275 = vrcp.pop %v1273
    %v1276 = vmul.f32 %v1265, %v1274
    %v1277 = vmul.f32 %v1267, %v1275
    %v1278 = vpack.c.bf16 %v1277, %v1276
    %1279 = vrot.lane.b32.xlu0 %v960, 64
    %v1280 = vpop.permute.xlu0 %1279
    %v1283 = vsel %vm486, %v1278, 0
    %1285 = vmatprep.subr.bf16.mxu0 0
    %1286 = vmatpush1.bf16.msra.mxu0 %v1280
    %1287 = vmatprep.subr.bf16.mxu0 0
    %1288 = vmatpush1.bf16.msra.mxu0 0
    %1289 = vmatprep.subr.bf16.mxu0 0
    %1290 = vmatpush1.bf16.msra.mxu0 0
    %1291 = vmatprep.subr.bf16.mxu0 0
    %1292 = vmatpush1.bf16.msra.mxu0 0
    %1293 = vmatprep.subr.bf16.mxu0 0
    %1294 = vmatpush1.bf16.msra.mxu0 0
    %1295 = vmatprep.subr.bf16.mxu0 0
    %1296 = vmatpush1.bf16.msra.mxu0 0
    %1297 = vmatprep.subr.bf16.mxu0 0
    %1298 = vmatpush1.bf16.msra.mxu0 0
    %1299 = vmatprep.subr.bf16.mxu0 0
    %1300 = vmatpush1.bf16.msra.mxu0 0
    %1301 = vmatprep.subr.bf16.mxu0 0
    %1302 = vmatpush1.bf16.msra.mxu0 0
    %1303 = vmatprep.subr.bf16.mxu0 0
    %1304 = vmatpush1.bf16.msra.mxu0 0
    %1305 = vmatprep.subr.bf16.mxu0 0
    %1306 = vmatpush1.bf16.msra.mxu0 0
    %1307 = vmatprep.subr.bf16.mxu0 0
    %1308 = vmatpush1.bf16.msra.mxu0 0
    %1309 = vmatprep.subr.bf16.mxu0 0
    %1310 = vmatpush1.bf16.msra.mxu0 0
    %1311 = vmatprep.subr.bf16.mxu0 0
    %1312 = vmatpush1.bf16.msra.mxu0 0
    %1313 = vmatprep.subr.bf16.mxu0 0
    %1314 = vmatpush1.bf16.msra.mxu0 0
    %1315 = vmatprep.subr.bf16.mxu0 0
    %1316 = vmatpush1.bf16.msra.mxu0 0
    %1317 = vmatprep.mubr.bf16.mxu0 0
    %1318 = vmatmul.mubr.bf16.gmra.mrb[0].mxu0 %v1283
    %v1319 = vpop.f32.mrb[0].mxu0
    %v1320 = vadd.f32 0.0, %v1319
    %v1321 = vpop.f32.mrb[0].mxu0
    %v1322 = vpop.f32.mrb[0].mxu0
    %v1323 = vadd.f32 0.0, %v1322
    %v1324 = vpop.f32.mrb[0].mxu0
    %1325 = vdwg.mxu0
    %1326 = vrot.lane.b32.xlu0 %v958, 32
    %v1327 = vpop.permute.xlu0 %1326
    %1328 = vrot.lane.b32.xlu0 %v959, 32
    %v1329 = vpop.permute.xlu0 %1328
    %v1331 = vsel %vm436, %v1327, 0
    %v1334 = vsel %vm436, %v1329, 0
    %1336 = vmatprep.subr.bf16.mxu0 0
    %1337 = vmatpush1.bf16.xpose.msra.mxu0 %v1334
    %1338 = vmatprep.subr.bf16.mxu0 0
    %1339 = vmatpush1.bf16.xpose.msra.mxu0 0
    %1340 = vmatprep.subr.bf16.mxu0 0
    %1341 = vmatpush1.bf16.xpose.msra.mxu0 0
    %1342 = vmatprep.subr.bf16.mxu0 0
    %1343 = vmatpush1.bf16.xpose.msra.mxu0 0
    %1344 = vmatprep.subr.bf16.mxu0 0
    %1345 = vmatpush1.bf16.xpose.msra.mxu0 0
    %1346 = vmatprep.subr.bf16.mxu0 0
    %1347 = vmatpush1.bf16.xpose.msra.mxu0 0
    %1348 = vmatprep.subr.bf16.mxu0 0
    %1349 = vmatpush1.bf16.xpose.msra.mxu0 0
    %1350 = vmatprep.subr.bf16.mxu0 0
    %1351 = vmatpush1.bf16.xpose.msra.mxu0 0
    %1352 = vmatprep.subr.bf16.mxu0 0
    %1353 = vmatpush1.bf16.xpose.msra.mxu0 0
    %1354 = vmatprep.subr.bf16.mxu0 0
    %1355 = vmatpush1.bf16.xpose.msra.mxu0 0
    %1356 = vmatprep.subr.bf16.mxu0 0
    %1357 = vmatpush1.bf16.xpose.msra.mxu0 0
    %1358 = vmatprep.subr.bf16.mxu0 0
    %1359 = vmatpush1.bf16.xpose.msra.mxu0 0
    %1360 = vmatprep.subr.bf16.mxu0 0
    %1361 = vmatpush1.bf16.xpose.msra.mxu0 0
    %1362 = vmatprep.subr.bf16.mxu0 0
    %1363 = vmatpush1.bf16.xpose.msra.mxu0 0
    %1364 = vmatprep.subr.bf16.mxu0 0
    %1365 = vmatpush1.bf16.xpose.msra.mxu0 0
    %1366 = vmatprep.subr.bf16.mxu0 0
    %1367 = vmatpush1.bf16.xpose.msra.mxu0 0
    %1368 = vmatprep.mubr.bf16.mxu0 0
    %1369 = vmatmul.mubr.bf16.gmra.mrb[0].mxu0 %v1331
    %v1370 = vpop.f32.mrb[0].mxu0
    %v1371 = vadd.f32 0.0, %v1370
    %v1372 = vpop.f32.mrb[0].mxu0
    %v1373 = vpop.f32.mrb[0].mxu0
    %v1374 = vadd.f32 0.0, %v1373
    %v1375 = vpop.f32.mrb[0].mxu0
    %1376 = vdwg.mxu0
    %v1377 = vsel %vm431, %v1371, -1e+30
    %v1378 = vsel %vm432, %v1374, -1e+30
    %v1379 = vsel %vm486, %v1377, -inf
    %1380 = vmax.xlane.f32.xlu0 %v1379
    %v1381 = vpop.xlane.xlu0 %1380
    %v1382 = vsel %vm486, %v1378, -inf
    %1383 = vmax.xlane.f32.xlu0 %v1382
    %v1384 = vpop.xlane.xlu0 %1383
    %v1385 = vsub.f32 %v1377, %v1381
    %v1386 = vsub.f32 %v1378, %v1384
    %v1387 = vmul.f32 %v1385, 1.442695
    %v1388 = vpow.pop %v1387
    %v1389 = vmul.f32 %v1386, 1.442695
    %v1390 = vpow.pop %v1389
    %v1391 = vsel %vm486, %v1388, 0.0
    %1392 = vadd.xlane.f32.xlu0 %v1391
    %v1393 = vpop.xlane.xlu0 %1392
    %v1394 = vsel %vm486, %v1390, 0.0
    %1395 = vadd.xlane.f32.xlu0 %v1394
    %v1396 = vpop.xlane.xlu0 %1395
    %v1397 = vrcp.pop %v1393
    %v1398 = vrcp.pop %v1396
    %v1399 = vmul.f32 %v1388, %v1397
    %v1400 = vmul.f32 %v1390, %v1398
    %v1401 = vpack.c.bf16 %v1400, %v1399
    %1402 = vrot.lane.b32.xlu0 %v960, 32
    %v1403 = vpop.permute.xlu0 %1402
    %v1406 = vsel %vm486, %v1401, 0
    %1408 = vmatprep.subr.bf16.mxu0 0
    %1409 = vmatpush1.bf16.msra.mxu0 %v1403
    %1410 = vmatprep.subr.bf16.mxu0 0
    %1411 = vmatpush1.bf16.msra.mxu0 0
    %1412 = vmatprep.subr.bf16.mxu0 0
    %1413 = vmatpush1.bf16.msra.mxu0 0
    %1414 = vmatprep.subr.bf16.mxu0 0
    %1415 = vmatpush1.bf16.msra.mxu0 0
    %1416 = vmatprep.subr.bf16.mxu0 0
    %1417 = vmatpush1.bf16.msra.mxu0 0
    %1418 = vmatprep.subr.bf16.mxu0 0
    %1419 = vmatpush1.bf16.msra.mxu0 0
    %1420 = vmatprep.subr.bf16.mxu0 0
    %1421 = vmatpush1.bf16.msra.mxu0 0
    %1422 = vmatprep.subr.bf16.mxu0 0
    %1423 = vmatpush1.bf16.msra.mxu0 0
    %1424 = vmatprep.subr.bf16.mxu0 0
    %1425 = vmatpush1.bf16.msra.mxu0 0
    %1426 = vmatprep.subr.bf16.mxu0 0
    %1427 = vmatpush1.bf16.msra.mxu0 0
    %1428 = vmatprep.subr.bf16.mxu0 0
    %1429 = vmatpush1.bf16.msra.mxu0 0
    %1430 = vmatprep.subr.bf16.mxu0 0
    %1431 = vmatpush1.bf16.msra.mxu0 0
    %1432 = vmatprep.subr.bf16.mxu0 0
    %1433 = vmatpush1.bf16.msra.mxu0 0
    %1434 = vmatprep.subr.bf16.mxu0 0
    %1435 = vmatpush1.bf16.msra.mxu0 0
    %1436 = vmatprep.subr.bf16.mxu0 0
    %1437 = vmatpush1.bf16.msra.mxu0 0
    %1438 = vmatprep.subr.bf16.mxu0 0
    %1439 = vmatpush1.bf16.msra.mxu0 0
    %1440 = vmatprep.mubr.bf16.mxu0 0
    %1441 = vmatmul.mubr.bf16.gmra.mrb[0].mxu0 %v1406
    %v1442 = vpop.f32.mrb[0].mxu0
    %v1443 = vadd.f32 0.0, %v1442
    %v1444 = vpop.f32.mrb[0].mxu0
    %v1445 = vpop.f32.mrb[0].mxu0
    %v1446 = vadd.f32 0.0, %v1445
    %v1447 = vpop.f32.mrb[0].mxu0
    %1448 = vdwg.mxu0
    %1451 = vrot.lane.b32.xlu0 %v1197, 32
    %v1452 = vpop.permute.xlu0 %1451
    %1453 = vrot.lane.b32.xlu0 %v1200, 32
    %v1454 = vpop.permute.xlu0 %1453
    %1459 = vrot.lane.b32.xlu0 %v1320, 64
    %v1460 = vpop.permute.xlu0 %1459
    %1461 = vrot.lane.b32.xlu0 %v1323, 64
    %v1462 = vpop.permute.xlu0 %1461
    %1467 = vrot.lane.b32.xlu0 %v1443, 96
    %v1468 = vpop.permute.xlu0 %1467
    %1469 = vrot.lane.b32.xlu0 %v1446, 96
    %v1470 = vpop.permute.xlu0 %1469
    %v1473 = vsel %vm436, %v1071, %v1452
    %v1474 = vsel %vm436, %v1074, %v1454
    %v1475 = vsel %vm952, %v1473, %v1460
    %v1476 = vsel %vm952, %v1474, %v1462
    %v1477 = vsel %vm955, %v1475, %v1468
    %v1478 = vsel %vm955, %v1476, %v1470
    %v1479 = vpack.c.bf16 %v957, %v956
    %v1480 = vpack.c.bf16 %v1478, %v1477
    %v1481 = vld [vmem:[#allocation7] sm:$0xf]
    %v1482 = vld [vmem:[#allocation7 + $0x4] sm:$0xf]
    %v1483 = vld [vmem:[#allocation7 + $0x8] sm:$0xf]
    %v1484 = vld [vmem:[#allocation7 + $0xc] sm:$0xf]
    %v1485 = vld [vmem:[#allocation7 + $0x10] sm:$0xf]
    %v1486 = vld [vmem:[#allocation7 + $0x14] sm:$0xf]
    %v1487 = vld [vmem:[#allocation7 + $0x18] sm:$0xf]
    %v1488 = vld [vmem:[#allocation7 + $0x1c] sm:$0xf]
    %v1489 = vld [vmem:[#allocation7 + $0x20] sm:$0xf]
    %v1490 = vld [vmem:[#allocation7 + $0x24] sm:$0xf]
    %v1491 = vld [vmem:[#allocation7 + $0x28] sm:$0xf]
    %v1492 = vld [vmem:[#allocation7 + $0x2c] sm:$0xf]
    %v1493 = vld [vmem:[#allocation7 + $0x30] sm:$0xf]
    %v1494 = vld [vmem:[#allocation7 + $0x34] sm:$0xf]
    %v1495 = vld [vmem:[#allocation7 + $0x38] sm:$0xf]
    %v1496 = vld [vmem:[#allocation7 + $0x3c] sm:$0xf]
    %v1497 = vlaneseq
    %v1498 = vshrl.u32 %v1497, 7
    %v1499 = vsub.s32 4, %v1498
    %v1500 = vrot.slane %v96, %v1499
    %v1517 = vunpack.c.l.b16 %v1481
    %v1518 = vunpack.c.l.b16 %v1482
    %v1519 = vunpack.c.l.b16 %v1483
    %v1520 = vunpack.c.l.b16 %v1484
    %v1521 = vunpack.c.l.b16 %v1485
    %v1522 = vunpack.c.l.b16 %v1486
    %v1523 = vunpack.c.l.b16 %v1487
    %v1524 = vunpack.c.l.b16 %v1488
    %v1525 = vunpack.c.l.b16 %v1489
    %v1526 = vunpack.c.l.b16 %v1490
    %v1527 = vunpack.c.l.b16 %v1491
    %v1528 = vunpack.c.l.b16 %v1492
    %v1529 = vunpack.c.l.b16 %v1493
    %v1530 = vunpack.c.l.b16 %v1494
    %v1531 = vunpack.c.l.b16 %v1495
    %v1532 = vunpack.c.l.b16 %v1496
    %v1533 = vpack.c.b16 %v1518, %v1517
    %v1534 = vpack.c.b16 %v1520, %v1519
    %v1535 = vpack.c.b16 %v1522, %v1521
    %v1536 = vpack.c.b16 %v1524, %v1523
    %v1537 = vpack.c.b16 %v1526, %v1525
    %v1538 = vpack.c.b16 %v1528, %v1527
    %v1539 = vpack.c.b16 %v1530, %v1529
    %v1540 = vpack.c.b16 %v1532, %v1531
    %1549 = vmatprep.subr.bf16.mxu0 0
    %1550 = vmatpush1.bf16.msra.mxu0 %v1533
    %1551 = vmatprep.subr.bf16.mxu0 0
    %1552 = vmatpush1.bf16.msra.mxu0 %v1534
    %1553 = vmatprep.subr.bf16.mxu0 0
    %1554 = vmatpush1.bf16.msra.mxu0 %v1535
    %1555 = vmatprep.subr.bf16.mxu0 0
    %1556 = vmatpush1.bf16.msra.mxu0 %v1536
    %1557 = vmatprep.subr.bf16.mxu0 0
    %1558 = vmatpush1.bf16.msra.mxu0 %v1537
    %1559 = vmatprep.subr.bf16.mxu0 0
    %1560 = vmatpush1.bf16.msra.mxu0 %v1538
    %1561 = vmatprep.subr.bf16.mxu0 0
    %1562 = vmatpush1.bf16.msra.mxu0 %v1539
    %1563 = vmatprep.subr.bf16.mxu0 0
    %1564 = vmatpush1.bf16.msra.mxu0 %v1540
    %1565 = vmatprep.subr.bf16.mxu0 0
    %1566 = vmatpush1.bf16.msra.mxu0 0
    %1567 = vmatprep.subr.bf16.mxu0 0
    %1568 = vmatpush1.bf16.msra.mxu0 0
    %1569 = vmatprep.subr.bf16.mxu0 0
    %1570 = vmatpush1.bf16.msra.mxu0 0
    %1571 = vmatprep.subr.bf16.mxu0 0
    %1572 = vmatpush1.bf16.msra.mxu0 0
    %1573 = vmatprep.subr.bf16.mxu0 0
    %1574 = vmatpush1.bf16.msra.mxu0 0
    %1575 = vmatprep.subr.bf16.mxu0 0
    %1576 = vmatpush1.bf16.msra.mxu0 0
    %1577 = vmatprep.subr.bf16.mxu0 0
    %1578 = vmatpush1.bf16.msra.mxu0 0
    %1579 = vmatprep.subr.bf16.mxu0 0
    %1580 = vmatpush1.bf16.msra.mxu0 0
    %1581 = vmatprep.mubr.bf16.mxu0 0
    %1582 = vmatmul.mubr.bf16.gmra.mrb[0].mxu0 %v1479
    %v1583 = vpop.f32.mrb[0].mxu0
    %v1584 = vadd.f32 %v1500, %v1583
    %v1585 = vpop.f32.mrb[0].mxu0
    %v1586 = vpop.f32.mrb[0].mxu0
    %v1587 = vadd.f32 %v1500, %v1586
    %v1588 = vpop.f32.mrb[0].mxu0
    %1589 = vmatprep.mubr.bf16.mxu0 0
    %1590 = vmatmul.mubr.bf16.gmra.mrb[0].mxu0 %v1480
    %v1591 = vpop.f32.mrb[0].mxu0
    %v1592 = vadd.f32 %v1500, %v1591
    %v1593 = vpop.f32.mrb[0].mxu0
    %v1594 = vpop.f32.mrb[0].mxu0
    %v1595 = vadd.f32 %v1500, %v1594
    %v1596 = vpop.f32.mrb[0].mxu0
    %1597 = vdwg.mxu0
    %v1598 = vadd.f32 %v158, %v1584
    %v1599 = vadd.f32 %v159, %v1587
    %v1600 = vadd.f32 %v160, %v1592
    %v1601 = vadd.f32 %v161, %v1595
    %1602 = vadd.xlane.f32.xlu0 %v1598
    %v1603 = vpop.xlane.xlu0 %1602
    %1604 = vadd.xlane.f32.xlu0 %v1599
    %v1605 = vpop.xlane.xlu0 %1604
    %1606 = vadd.xlane.f32.xlu0 %v1600
    %v1607 = vpop.xlane.xlu0 %1606
    %1608 = vadd.xlane.f32.xlu0 %v1601
    %v1609 = vpop.xlane.xlu0 %1608
    %v1610 = vmul.f32 %v1603, %v109
    %v1611 = vmul.f32 %v1605, %v109
    %v1612 = vmul.f32 %v1607, %v109
    %v1613 = vmul.f32 %v1609, %v109
    %v1614 = vsub.f32 %v1598, %v1610
    %v1615 = vsub.f32 %v1599, %v1611
    %v1616 = vsub.f32 %v1600, %v1612
    %v1617 = vsub.f32 %v1601, %v1613
    %v1618 = vmul.f32 %v1614, %v1614
    %v1619 = vmul.f32 %v1615, %v1615
    %v1620 = vmul.f32 %v1616, %v1616
    %v1621 = vmul.f32 %v1617, %v1617
    %1622 = vadd.xlane.f32.xlu0 %v1618
    %v1623 = vpop.xlane.xlu0 %1622
    %1624 = vadd.xlane.f32.xlu0 %v1619
    %v1625 = vpop.xlane.xlu0 %1624
    %1626 = vadd.xlane.f32.xlu0 %v1620
    %v1627 = vpop.xlane.xlu0 %1626
    %1628 = vadd.xlane.f32.xlu0 %v1621
    %v1629 = vpop.xlane.xlu0 %1628
    %v1630 = vmul.f32 %v1623, %v109
    %v1631 = vmul.f32 %v1625, %v109
    %v1632 = vmul.f32 %v1627, %v109
    %v1633 = vmul.f32 %v1629, %v109
    %v1634 = vadd.f32 %v1630, 1e-05
    %v1635 = vadd.f32 %v1631, 1e-05
    %v1636 = vadd.f32 %v1632, 1e-05
    %v1637 = vadd.f32 %v1633, 1e-05
    %v1638 = vrsqrt.pop %v1634
    %v1639 = vrsqrt.pop %v1635
    %v1640 = vrsqrt.pop %v1636
    %v1641 = vrsqrt.pop %v1637
    %v1642 = vmul.f32 %v1614, %v1638
    %v1643 = vmul.f32 %v1615, %v1639
    %v1644 = vmul.f32 %v1616, %v1640
    %v1645 = vmul.f32 %v1617, %v1641
    %v1646 = vlaneseq
    %v1647 = vshrl.u32 %v1646, 7
    %v1648 = vsub.s32 2, %v1647
    %v1649 = vrot.slane %v96, %v1648
    %v1650 = vmul.f32 %v1642, %v1649
    %v1651 = vmul.f32 %v1643, %v1649
    %v1652 = vmul.f32 %v1644, %v1649
    %v1653 = vmul.f32 %v1645, %v1649
    %v1654 = vlaneseq
    %v1655 = vshrl.u32 %v1654, 7
    %v1656 = vsub.s32 3, %v1655
    %v1657 = vrot.slane %v96, %v1656
    %v1658 = vadd.f32 %v1650, %v1657
    %v1659 = vadd.f32 %v1651, %v1657
    %v1660 = vadd.f32 %v1652, %v1657
    %v1661 = vadd.f32 %v1653, %v1657
    %v1662 = vpack.c.bf16 %v1659, %v1658
    %v1663 = vpack.c.bf16 %v1661, %v1660
    %v1664 = vld [vmem:[#allocation8] sm:$0xff]
    %v1665 = vld [vmem:[#allocation8 + $0x8] sm:$0xff]
    %v1666 = vld [vmem:[#allocation8 + $0x10] sm:$0xff]
    %v1667 = vld [vmem:[#allocation8 + $0x18] sm:$0xff]
    %v1668 = vld [vmem:[#allocation8 + $0x20] sm:$0xff]
    %v1669 = vld [vmem:[#allocation8 + $0x28] sm:$0xff]
    %v1670 = vld [vmem:[#allocation8 + $0x30] sm:$0xff]
    %v1671 = vld [vmem:[#allocation8 + $0x38] sm:$0xff]
    %v1672 = vld [vmem:[#allocation8 + $0x40] sm:$0xff]
    %v1673 = vld [vmem:[#allocation8 + $0x48] sm:$0xff]
    %v1674 = vld [vmem:[#allocation8 + $0x50] sm:$0xff]
    %v1675 = vld [vmem:[#allocation8 + $0x58] sm:$0xff]
    %v1676 = vld [vmem:[#allocation8 + $0x60] sm:$0xff]
    %v1677 = vld [vmem:[#allocation8 + $0x68] sm:$0xff]
    %v1678 = vld [vmem:[#allocation8 + $0x70] sm:$0xff]
    %v1679 = vld [vmem:[#allocation8 + $0x78] sm:$0xff]
    %v1680 = vld [vmem:[#allocation8 + $0x80] sm:$0xff]
    %v1681 = vld [vmem:[#allocation8 + $0x88] sm:$0xff]
    %v1682 = vld [vmem:[#allocation8 + $0x90] sm:$0xff]
    %v1683 = vld [vmem:[#allocation8 + $0x98] sm:$0xff]
    %v1684 = vld [vmem:[#allocation8 + $0xa0] sm:$0xff]
    %v1685 = vld [vmem:[#allocation8 + $0xa8] sm:$0xff]
    %v1686 = vld [vmem:[#allocation8 + $0xb0] sm:$0xff]
    %v1687 = vld [vmem:[#allocation8 + $0xb8] sm:$0xff]
    %v1688 = vld [vmem:[#allocation8 + $0xc0] sm:$0xff]
    %v1689 = vld [vmem:[#allocation8 + $0xc8] sm:$0xff]
    %v1690 = vld [vmem:[#allocation8 + $0xd0] sm:$0xff]
    %v1691 = vld [vmem:[#allocation8 + $0xd8] sm:$0xff]
    %v1692 = vld [vmem:[#allocation8 + $0xe0] sm:$0xff]
    %v1693 = vld [vmem:[#allocation8 + $0xe8] sm:$0xff]
    %v1694 = vld [vmem:[#allocation8 + $0xf0] sm:$0xff]
    %v1695 = vld [vmem:[#allocation8 + $0xf8] sm:$0xff]
    %v1696 = vld [vmem:[%s6] sm:$0xf]
    %v1698 = vlaneseq
    %v1699 = vshrl.u32 %v1698, 7
    %v1700 = vsub.s32 0, %v1699
    %v1701 = vrot.slane %v1696, %v1700
    %v1702 = vlaneseq
    %v1703 = vshrl.u32 %v1702, 7
    %v1704 = vsub.s32 1, %v1703
    %v1705 = vrot.slane %v1696, %v1704
    %v1706 = vlaneseq
    %v1707 = vshrl.u32 %v1706, 7
    %v1708 = vsub.s32 2, %v1707
    %v1709 = vrot.slane %v1696, %v1708
    %v1710 = vlaneseq
    %v1711 = vshrl.u32 %v1710, 7
    %v1712 = vsub.s32 3, %v1711
    %v1713 = vrot.slane %v1696, %v1712
    %v1750 = vunpack.c.l.b16 %v1664
    %v1751 = vunpack.c.h.b16 %v1664
    %v1752 = vunpack.c.l.b16 %v1665
    %v1753 = vunpack.c.h.b16 %v1665
    %v1754 = vunpack.c.l.b16 %v1666
    %v1755 = vunpack.c.h.b16 %v1666
    %v1756 = vunpack.c.l.b16 %v1667
    %v1757 = vunpack.c.h.b16 %v1667
    %v1758 = vunpack.c.l.b16 %v1668
    %v1759 = vunpack.c.h.b16 %v1668
    %v1760 = vunpack.c.l.b16 %v1669
    %v1761 = vunpack.c.h.b16 %v1669
    %v1762 = vunpack.c.l.b16 %v1670
    %v1763 = vunpack.c.h.b16 %v1670
    %v1764 = vunpack.c.l.b16 %v1671
    %v1765 = vunpack.c.h.b16 %v1671
    %v1766 = vunpack.c.l.b16 %v1672
    %v1767 = vunpack.c.h.b16 %v1672
    %v1768 = vunpack.c.l.b16 %v1673
    %v1769 = vunpack.c.h.b16 %v1673
    %v1770 = vunpack.c.l.b16 %v1674
    %v1771 = vunpack.c.h.b16 %v1674
    %v1772 = vunpack.c.l.b16 %v1675
    %v1773 = vunpack.c.h.b16 %v1675
    %v1774 = vunpack.c.l.b16 %v1676
    %v1775 = vunpack.c.h.b16 %v1676
    %v1776 = vunpack.c.l.b16 %v1677
    %v1777 = vunpack.c.h.b16 %v1677
    %v1778 = vunpack.c.l.b16 %v1678
    %v1779 = vunpack.c.h.b16 %v1678
    %v1780 = vunpack.c.l.b16 %v1679
    %v1781 = vunpack.c.h.b16 %v1679
    %v1782 = vunpack.c.l.b16 %v1680
    %v1783 = vunpack.c.h.b16 %v1680
    %v1784 = vunpack.c.l.b16 %v1681
    %v1785 = vunpack.c.h.b16 %v1681
    %v1786 = vunpack.c.l.b16 %v1682
    %v1787 = vunpack.c.h.b16 %v1682
    %v1788 = vunpack.c.l.b16 %v1683
    %v1789 = vunpack.c.h.b16 %v1683
    %v1790 = vunpack.c.l.b16 %v1684
    %v1791 = vunpack.c.h.b16 %v1684
    %v1792 = vunpack.c.l.b16 %v1685
    %v1793 = vunpack.c.h.b16 %v1685
    %v1794 = vunpack.c.l.b16 %v1686
    %v1795 = vunpack.c.h.b16 %v1686
    %v1796 = vunpack.c.l.b16 %v1687
    %v1797 = vunpack.c.h.b16 %v1687
    %v1798 = vunpack.c.l.b16 %v1688
    %v1799 = vunpack.c.h.b16 %v1688
    %v1800 = vunpack.c.l.b16 %v1689
    %v1801 = vunpack.c.h.b16 %v1689
    %v1802 = vunpack.c.l.b16 %v1690
    %v1803 = vunpack.c.h.b16 %v1690
    %v1804 = vunpack.c.l.b16 %v1691
    %v1805 = vunpack.c.h.b16 %v1691
    %v1806 = vunpack.c.l.b16 %v1692
    %v1807 = vunpack.c.h.b16 %v1692
    %v1808 = vunpack.c.l.b16 %v1693
    %v1809 = vunpack.c.h.b16 %v1693
    %v1810 = vunpack.c.l.b16 %v1694
    %v1811 = vunpack.c.h.b16 %v1694
    %v1812 = vunpack.c.l.b16 %v1695
    %v1813 = vunpack.c.h.b16 %v1695
    %v1814 = vpack.c.b16 %v1754, %v1750
    %v1815 = vpack.c.b16 %v1755, %v1751
    %v1816 = vpack.c.b16 %v1756, %v1752
    %v1817 = vpack.c.b16 %v1757, %v1753
    %v1818 = vpack.c.b16 %v1762, %v1758
    %v1819 = vpack.c.b16 %v1763, %v1759
    %v1820 = vpack.c.b16 %v1764, %v1760
    %v1821 = vpack.c.b16 %v1765, %v1761
    %v1822 = vpack.c.b16 %v1770, %v1766
    %v1823 = vpack.c.b16 %v1771, %v1767
    %v1824 = vpack.c.b16 %v1772, %v1768
    %v1825 = vpack.c.b16 %v1773, %v1769
    %v1826 = vpack.c.b16 %v1778, %v1774
    %v1827 = vpack.c.b16 %v1779, %v1775
    %v1828 = vpack.c.b16 %v1780, %v1776
    %v1829 = vpack.c.b16 %v1781, %v1777
    %v1830 = vpack.c.b16 %v1786, %v1782
    %v1831 = vpack.c.b16 %v1787, %v1783
    %v1832 = vpack.c.b16 %v1788, %v1784
    %v1833 = vpack.c.b16 %v1789, %v1785
    %v1834 = vpack.c.b16 %v1794, %v1790
    %v1835 = vpack.c.b16 %v1795, %v1791
    %v1836 = vpack.c.b16 %v1796, %v1792
    %v1837 = vpack.c.b16 %v1797, %v1793
    %v1838 = vpack.c.b16 %v1802, %v1798
    %v1839 = vpack.c.b16 %v1803, %v1799
    %v1840 = vpack.c.b16 %v1804, %v1800
    %v1841 = vpack.c.b16 %v1805, %v1801
    %v1842 = vpack.c.b16 %v1810, %v1806
    %v1843 = vpack.c.b16 %v1811, %v1807
    %v1844 = vpack.c.b16 %v1812, %v1808
    %v1845 = vpack.c.b16 %v1813, %v1809
    %1878 = vmatprep.subr.bf16.mxu0 %v1815
    %1879 = vmatpush1.bf16.msra.mxu0 %v1814
    %1880 = vmatprep.subr.bf16.mxu0 %v1819
    %1881 = vmatpush1.bf16.msra.mxu0 %v1818
    %1882 = vmatprep.subr.bf16.mxu0 %v1823
    %1883 = vmatpush1.bf16.msra.mxu0 %v1822
    %1884 = vmatprep.subr.bf16.mxu0 %v1827
    %1885 = vmatpush1.bf16.msra.mxu0 %v1826
    %1886 = vmatprep.subr.bf16.mxu0 %v1831
    %1887 = vmatpush1.bf16.msra.mxu0 %v1830
    %1888 = vmatprep.subr.bf16.mxu0 %v1835
    %1889 = vmatpush1.bf16.msra.mxu0 %v1834
    %1890 = vmatprep.subr.bf16.mxu0 %v1839
    %1891 = vmatpush1.bf16.msra.mxu0 %v1838
    %1892 = vmatprep.subr.bf16.mxu0 %v1843
    %1893 = vmatpush1.bf16.msra.mxu0 %v1842
    %1894 = vmatprep.subr.bf16.mxu0 0
    %1895 = vmatpush1.bf16.msra.mxu0 0
    %1896 = vmatprep.subr.bf16.mxu0 0
    %1897 = vmatpush1.bf16.msra.mxu0 0
    %1898 = vmatprep.subr.bf16.mxu0 0
    %1899 = vmatpush1.bf16.msra.mxu0 0
    %1900 = vmatprep.subr.bf16.mxu0 0
    %1901 = vmatpush1.bf16.msra.mxu0 0
    %1902 = vmatprep.subr.bf16.mxu0 0
    %1903 = vmatpush1.bf16.msra.mxu0 0
    %1904 = vmatprep.subr.bf16.mxu0 0
    %1905 = vmatpush1.bf16.msra.mxu0 0
    %1906 = vmatprep.subr.bf16.mxu0 0
    %1907 = vmatpush1.bf16.msra.mxu0 0
    %1908 = vmatprep.subr.bf16.mxu0 0
    %1909 = vmatpush1.bf16.msra.mxu0 0
    %1910 = vmatprep.mubr.bf16.mxu0 0
    %1911 = vmatmul.mubr.bf16.gmra.mrb[0].mxu0 %v1662
    %v1912 = vpop.f32.mrb[0].mxu0
    %v1913 = vadd.f32 %v1701, %v1912
    %v1914 = vpop.f32.mrb[0].mxu0
    %v1915 = vadd.f32 %v1705, %v1914
    %v1916 = vpop.f32.mrb[0].mxu0
    %v1917 = vadd.f32 %v1701, %v1916
    %v1918 = vpop.f32.mrb[0].mxu0
    %v1919 = vadd.f32 %v1705, %v1918
    %1920 = vmatprep.mubr.bf16.mxu0 0
    %1921 = vmatmul.mubr.bf16.gmra.mrb[0].mxu0 %v1663
    %v1922 = vpop.f32.mrb[0].mxu0
    %v1923 = vadd.f32 %v1701, %v1922
    %v1924 = vpop.f32.mrb[0].mxu0
    %v1925 = vadd.f32 %v1705, %v1924
    %v1926 = vpop.f32.mrb[0].mxu0
    %v1927 = vadd.f32 %v1701, %v1926
    %v1928 = vpop.f32.mrb[0].mxu0
    %v1929 = vadd.f32 %v1705, %v1928
    %1930 = vdwg.mxu0
    %1931 = vmatprep.subr.bf16.mxu0 %v1817
    %1932 = vmatpush1.bf16.msra.mxu0 %v1816
    %1933 = vmatprep.subr.bf16.mxu0 %v1821
    %1934 = vmatpush1.bf16.msra.mxu0 %v1820
    %1935 = vmatprep.subr.bf16.mxu0 %v1825
    %1936 = vmatpush1.bf16.msra.mxu0 %v1824
    %1937 = vmatprep.subr.bf16.mxu0 %v1829
    %1938 = vmatpush1.bf16.msra.mxu0 %v1828
    %1939 = vmatprep.subr.bf16.mxu0 %v1833
    %1940 = vmatpush1.bf16.msra.mxu0 %v1832
    %1941 = vmatprep.subr.bf16.mxu0 %v1837
    %1942 = vmatpush1.bf16.msra.mxu0 %v1836
    %1943 = vmatprep.subr.bf16.mxu0 %v1841
    %1944 = vmatpush1.bf16.msra.mxu0 %v1840
    %1945 = vmatprep.subr.bf16.mxu0 %v1845
    %1946 = vmatpush1.bf16.msra.mxu0 %v1844
    %1947 = vmatprep.subr.bf16.mxu0 0
    %1948 = vmatpush1.bf16.msra.mxu0 0
    %1949 = vmatprep.subr.bf16.mxu0 0
    %1950 = vmatpush1.bf16.msra.mxu0 0
    %1951 = vmatprep.subr.bf16.mxu0 0
    %1952 = vmatpush1.bf16.msra.mxu0 0
    %1953 = vmatprep.subr.bf16.mxu0 0
    %1954 = vmatpush1.bf16.msra.mxu0 0
    %1955 = vmatprep.subr.bf16.mxu0 0
    %1956 = vmatpush1.bf16.msra.mxu0 0
    %1957 = vmatprep.subr.bf16.mxu0 0
    %1958 = vmatpush1.bf16.msra.mxu0 0
    %1959 = vmatprep.subr.bf16.mxu0 0
    %1960 = vmatpush1.bf16.msra.mxu0 0
    %1961 = vmatprep.subr.bf16.mxu0 0
    %1962 = vmatpush1.bf16.msra.mxu0 0
    %1963 = vmatprep.mubr.bf16.mxu0 0
    %1964 = vmatmul.mubr.bf16.gmra.mrb[0].mxu0 %v1662
    %v1965 = vpop.f32.mrb[0].mxu0
    %v1966 = vadd.f32 %v1709, %v1965
    %v1967 = vpop.f32.mrb[0].mxu0
    %v1968 = vadd.f32 %v1713, %v1967
    %v1969 = vpop.f32.mrb[0].mxu0
    %v1970 = vadd.f32 %v1709, %v1969
    %v1971 = vpop.f32.mrb[0].mxu0
    %v1972 = vadd.f32 %v1713, %v1971
    %1973 = vmatprep.mubr.bf16.mxu0 0
    %1974 = vmatmul.mubr.bf16.gmra.mrb[0].mxu0 %v1663
    %v1975 = vpop.f32.mrb[0].mxu0
    %v1976 = vadd.f32 %v1709, %v1975
    %v1977 = vpop.f32.mrb[0].mxu0
    %v1978 = vadd.f32 %v1713, %v1977
    %v1979 = vpop.f32.mrb[0].mxu0
    %v1980 = vadd.f32 %v1709, %v1979
    %v1981 = vpop.f32.mrb[0].mxu0
    %v1982 = vadd.f32 %v1713, %v1981
    %1983 = vdwg.mxu0
    %v1984 = vmax.f32 %v1913, 0.0
    %v1985 = vmax.f32 %v1915, 0.0
    %v1986 = vmax.f32 %v1966, 0.0
    %v1987 = vmax.f32 %v1968, 0.0
    %v1988 = vmax.f32 %v1917, 0.0
    %v1989 = vmax.f32 %v1919, 0.0
    %v1990 = vmax.f32 %v1970, 0.0
    %v1991 = vmax.f32 %v1972, 0.0
    %v1992 = vmax.f32 %v1923, 0.0
    %v1993 = vmax.f32 %v1925, 0.0
    %v1994 = vmax.f32 %v1976, 0.0
    %v1995 = vmax.f32 %v1978, 0.0
    %v1996 = vmax.f32 %v1927, 0.0
    %v1997 = vmax.f32 %v1929, 0.0
    %v1998 = vmax.f32 %v1980, 0.0
    %v1999 = vmax.f32 %v1982, 0.0
    %v2000 = vpack.c.bf16 %v1988, %v1984
    %v2001 = vpack.c.bf16 %v1989, %v1985
    %v2002 = vpack.c.bf16 %v1990, %v1986
    %v2003 = vpack.c.bf16 %v1991, %v1987
    %v2004 = vpack.c.bf16 %v1996, %v1992
    %v2005 = vpack.c.bf16 %v1997, %v1993
    %v2006 = vpack.c.bf16 %v1998, %v1994
    %v2007 = vpack.c.bf16 %v1999, %v1995
    %v2008 = vld [vmem:[#allocation10] sm:$0xf]
    %v2009 = vld [vmem:[#allocation10 + $0x4] sm:$0xf]
    %v2010 = vld [vmem:[#allocation10 + $0x8] sm:$0xf]
    %v2011 = vld [vmem:[#allocation10 + $0xc] sm:$0xf]
    %v2012 = vld [vmem:[#allocation10 + $0x10] sm:$0xf]
    %v2013 = vld [vmem:[#allocation10 + $0x14] sm:$0xf]
    %v2014 = vld [vmem:[#allocation10 + $0x18] sm:$0xf]
    %v2015 = vld [vmem:[#allocation10 + $0x1c] sm:$0xf]
    %v2016 = vld [vmem:[#allocation10 + $0x20] sm:$0xf]
    %v2017 = vld [vmem:[#allocation10 + $0x24] sm:$0xf]
    %v2018 = vld [vmem:[#allocation10 + $0x28] sm:$0xf]
    %v2019 = vld [vmem:[#allocation10 + $0x2c] sm:$0xf]
    %v2020 = vld [vmem:[#allocation10 + $0x30] sm:$0xf]
    %v2021 = vld [vmem:[#allocation10 + $0x34] sm:$0xf]
    %v2022 = vld [vmem:[#allocation10 + $0x38] sm:$0xf]
    %v2023 = vld [vmem:[#allocation10 + $0x3c] sm:$0xf]
    %v2024 = vld [vmem:[#allocation10 + $0x40] sm:$0xf]
    %v2025 = vld [vmem:[#allocation10 + $0x44] sm:$0xf]
    %v2026 = vld [vmem:[#allocation10 + $0x48] sm:$0xf]
    %v2027 = vld [vmem:[#allocation10 + $0x4c] sm:$0xf]
    %v2028 = vld [vmem:[#allocation10 + $0x50] sm:$0xf]
    %v2029 = vld [vmem:[#allocation10 + $0x54] sm:$0xf]
    %v2030 = vld [vmem:[#allocation10 + $0x58] sm:$0xf]
    %v2031 = vld [vmem:[#allocation10 + $0x5c] sm:$0xf]
    %v2032 = vld [vmem:[#allocation10 + $0x60] sm:$0xf]
    %v2033 = vld [vmem:[#allocation10 + $0x64] sm:$0xf]
    %v2034 = vld [vmem:[#allocation10 + $0x68] sm:$0xf]
    %v2035 = vld [vmem:[#allocation10 + $0x6c] sm:$0xf]
    %v2036 = vld [vmem:[#allocation10 + $0x70] sm:$0xf]
    %v2037 = vld [vmem:[#allocation10 + $0x74] sm:$0xf]
    %v2038 = vld [vmem:[#allocation10 + $0x78] sm:$0xf]
    %v2039 = vld [vmem:[#allocation10 + $0x7c] sm:$0xf]
    %v2040 = vld [vmem:[#allocation10 + $0x80] sm:$0xf]
    %v2041 = vld [vmem:[#allocation10 + $0x84] sm:$0xf]
    %v2042 = vld [vmem:[#allocation10 + $0x88] sm:$0xf]
    %v2043 = vld [vmem:[#allocation10 + $0x8c] sm:$0xf]
    %v2044 = vld [vmem:[#allocation10 + $0x90] sm:$0xf]
    %v2045 = vld [vmem:[#allocation10 + $0x94] sm:$0xf]
    %v2046 = vld [vmem:[#allocation10 + $0x98] sm:$0xf]
    %v2047 = vld [vmem:[#allocation10 + $0x9c] sm:$0xf]
    %v2048 = vld [vmem:[#allocation10 + $0xa0] sm:$0xf]
    %v2049 = vld [vmem:[#allocation10 + $0xa4] sm:$0xf]
    %v2050 = vld [vmem:[#allocation10 + $0xa8] sm:$0xf]
    %v2051 = vld [vmem:[#allocation10 + $0xac] sm:$0xf]
    %v2052 = vld [vmem:[#allocation10 + $0xb0] sm:$0xf]
    %v2053 = vld [vmem:[#allocation10 + $0xb4] sm:$0xf]
    %v2054 = vld [vmem:[#allocation10 + $0xb8] sm:$0xf]
    %v2055 = vld [vmem:[#allocation10 + $0xbc] sm:$0xf]
    %v2056 = vld [vmem:[#allocation10 + $0xc0] sm:$0xf]
    %v2057 = vld [vmem:[#allocation10 + $0xc4] sm:$0xf]
    %v2058 = vld [vmem:[#allocation10 + $0xc8] sm:$0xf]
    %v2059 = vld [vmem:[#allocation10 + $0xcc] sm:$0xf]
    %v2060 = vld [vmem:[#allocation10 + $0xd0] sm:$0xf]
    %v2061 = vld [vmem:[#allocation10 + $0xd4] sm:$0xf]
    %v2062 = vld [vmem:[#allocation10 + $0xd8] sm:$0xf]
    %v2063 = vld [vmem:[#allocation10 + $0xdc] sm:$0xf]
    %v2064 = vld [vmem:[#allocation10 + $0xe0] sm:$0xf]
    %v2065 = vld [vmem:[#allocation10 + $0xe4] sm:$0xf]
    %v2066 = vld [vmem:[#allocation10 + $0xe8] sm:$0xf]
    %v2067 = vld [vmem:[#allocation10 + $0xec] sm:$0xf]
    %v2068 = vld [vmem:[#allocation10 + $0xf0] sm:$0xf]
    %v2069 = vld [vmem:[#allocation10 + $0xf4] sm:$0xf]
    %v2070 = vld [vmem:[#allocation10 + $0xf8] sm:$0xf]
    %v2071 = vld [vmem:[#allocation10 + $0xfc] sm:$0xf]
    %v2072 = vlaneseq
    %v2073 = vshrl.u32 %v2072, 7
    %v2074 = vsub.s32 5, %v2073
    %v2075 = vrot.slane %v96, %v2074
    %v2140 = vunpack.c.l.b16 %v2008
    %v2141 = vunpack.c.l.b16 %v2009
    %v2142 = vunpack.c.l.b16 %v2010
    %v2143 = vunpack.c.l.b16 %v2011
    %v2144 = vunpack.c.l.b16 %v2012
    %v2145 = vunpack.c.l.b16 %v2013
    %v2146 = vunpack.c.l.b16 %v2014
    %v2147 = vunpack.c.l.b16 %v2015
    %v2148 = vunpack.c.l.b16 %v2016
    %v2149 = vunpack.c.l.b16 %v2017
    %v2150 = vunpack.c.l.b16 %v2018
    %v2151 = vunpack.c.l.b16 %v2019
    %v2152 = vunpack.c.l.b16 %v2020
    %v2153 = vunpack.c.l.b16 %v2021
    %v2154 = vunpack.c.l.b16 %v2022
    %v2155 = vunpack.c.l.b16 %v2023
    %v2156 = vunpack.c.l.b16 %v2024
    %v2157 = vunpack.c.l.b16 %v2025
    %v2158 = vunpack.c.l.b16 %v2026
    %v2159 = vunpack.c.l.b16 %v2027
    %v2160 = vunpack.c.l.b16 %v2028
    %v2161 = vunpack.c.l.b16 %v2029
    %v2162 = vunpack.c.l.b16 %v2030
    %v2163 = vunpack.c.l.b16 %v2031
    %v2164 = vunpack.c.l.b16 %v2032
    %v2165 = vunpack.c.l.b16 %v2033
    %v2166 = vunpack.c.l.b16 %v2034
    %v2167 = vunpack.c.l.b16 %v2035
    %v2168 = vunpack.c.l.b16 %v2036
    %v2169 = vunpack.c.l.b16 %v2037
    %v2170 = vunpack.c.l.b16 %v2038
    %v2171 = vunpack.c.l.b16 %v2039
    %v2172 = vunpack.c.l.b16 %v2040
    %v2173 = vunpack.c.l.b16 %v2041
    %v2174 = vunpack.c.l.b16 %v2042
    %v2175 = vunpack.c.l.b16 %v2043
    %v2176 = vunpack.c.l.b16 %v2044
    %v2177 = vunpack.c.l.b16 %v2045
    %v2178 = vunpack.c.l.b16 %v2046
    %v2179 = vunpack.c.l.b16 %v2047
    %v2180 = vunpack.c.l.b16 %v2048
    %v2181 = vunpack.c.l.b16 %v2049
    %v2182 = vunpack.c.l.b16 %v2050
    %v2183 = vunpack.c.l.b16 %v2051
    %v2184 = vunpack.c.l.b16 %v2052
    %v2185 = vunpack.c.l.b16 %v2053
    %v2186 = vunpack.c.l.b16 %v2054
    %v2187 = vunpack.c.l.b16 %v2055
    %v2188 = vunpack.c.l.b16 %v2056
    %v2189 = vunpack.c.l.b16 %v2057
    %v2190 = vunpack.c.l.b16 %v2058
    %v2191 = vunpack.c.l.b16 %v2059
    %v2192 = vunpack.c.l.b16 %v2060
    %v2193 = vunpack.c.l.b16 %v2061
    %v2194 = vunpack.c.l.b16 %v2062
    %v2195 = vunpack.c.l.b16 %v2063
    %v2196 = vunpack.c.l.b16 %v2064
    %v2197 = vunpack.c.l.b16 %v2065
    %v2198 = vunpack.c.l.b16 %v2066
    %v2199 = vunpack.c.l.b16 %v2067
    %v2200 = vunpack.c.l.b16 %v2068
    %v2201 = vunpack.c.l.b16 %v2069
    %v2202 = vunpack.c.l.b16 %v2070
    %v2203 = vunpack.c.l.b16 %v2071
    %v2204 = vpack.c.b16 %v2141, %v2140
    %v2205 = vpack.c.b16 %v2143, %v2142
    %v2206 = vpack.c.b16 %v2145, %v2144
    %v2207 = vpack.c.b16 %v2147, %v2146
    %v2208 = vpack.c.b16 %v2149, %v2148
    %v2209 = vpack.c.b16 %v2151, %v2150
    %v2210 = vpack.c.b16 %v2153, %v2152
    %v2211 = vpack.c.b16 %v2155, %v2154
    %v2212 = vpack.c.b16 %v2157, %v2156
    %v2213 = vpack.c.b16 %v2159, %v2158
    %v2214 = vpack.c.b16 %v2161, %v2160
    %v2215 = vpack.c.b16 %v2163, %v2162
    %v2216 = vpack.c.b16 %v2165, %v2164
    %v2217 = vpack.c.b16 %v2167, %v2166
    %v2218 = vpack.c.b16 %v2169, %v2168
    %v2219 = vpack.c.b16 %v2171, %v2170
    %v2220 = vpack.c.b16 %v2173, %v2172
    %v2221 = vpack.c.b16 %v2175, %v2174
    %v2222 = vpack.c.b16 %v2177, %v2176
    %v2223 = vpack.c.b16 %v2179, %v2178
    %v2224 = vpack.c.b16 %v2181, %v2180
    %v2225 = vpack.c.b16 %v2183, %v2182
    %v2226 = vpack.c.b16 %v2185, %v2184
    %v2227 = vpack.c.b16 %v2187, %v2186
    %v2228 = vpack.c.b16 %v2189, %v2188
    %v2229 = vpack.c.b16 %v2191, %v2190
    %v2230 = vpack.c.b16 %v2193, %v2192
    %v2231 = vpack.c.b16 %v2195, %v2194
    %v2232 = vpack.c.b16 %v2197, %v2196
    %v2233 = vpack.c.b16 %v2199, %v2198
    %v2234 = vpack.c.b16 %v2201, %v2200
    %v2235 = vpack.c.b16 %v2203, %v2202
    %2268 = vmatprep.subr.bf16.mxu0 0
    %2269 = vmatpush1.bf16.msra.mxu0 %v2204
    %2270 = vmatprep.subr.bf16.mxu0 0
    %2271 = vmatpush1.bf16.msra.mxu0 %v2205
    %2272 = vmatprep.subr.bf16.mxu0 0
    %2273 = vmatpush1.bf16.msra.mxu0 %v2206
    %2274 = vmatprep.subr.bf16.mxu0 0
    %2275 = vmatpush1.bf16.msra.mxu0 %v2207
    %2276 = vmatprep.subr.bf16.mxu0 0
    %2277 = vmatpush1.bf16.msra.mxu0 %v2208
    %2278 = vmatprep.subr.bf16.mxu0 0
    %2279 = vmatpush1.bf16.msra.mxu0 %v2209
    %2280 = vmatprep.subr.bf16.mxu0 0
    %2281 = vmatpush1.bf16.msra.mxu0 %v2210
    %2282 = vmatprep.subr.bf16.mxu0 0
    %2283 = vmatpush1.bf16.msra.mxu0 %v2211
    %2284 = vmatprep.subr.bf16.mxu0 0
    %2285 = vmatpush1.bf16.msra.mxu0 %v2212
    %2286 = vmatprep.subr.bf16.mxu0 0
    %2287 = vmatpush1.bf16.msra.mxu0 %v2213
    %2288 = vmatprep.subr.bf16.mxu0 0
    %2289 = vmatpush1.bf16.msra.mxu0 %v2214
    %2290 = vmatprep.subr.bf16.mxu0 0
    %2291 = vmatpush1.bf16.msra.mxu0 %v2215
    %2292 = vmatprep.subr.bf16.mxu0 0
    %2293 = vmatpush1.bf16.msra.mxu0 %v2216
    %2294 = vmatprep.subr.bf16.mxu0 0
    %2295 = vmatpush1.bf16.msra.mxu0 %v2217
    %2296 = vmatprep.subr.bf16.mxu0 0
    %2297 = vmatpush1.bf16.msra.mxu0 %v2218
    %2298 = vmatprep.subr.bf16.mxu0 0
    %2299 = vmatpush1.bf16.msra.mxu0 %v2219
    %2300 = vmatprep.mubr.bf16.mxu0 %v2001
    %2301 = vmatmul.mubr.bf16.gmra.mrb[0].mxu0 %v2000
    %v2302 = vpop.f32.mrb[0].mxu0
    %v2303 = vadd.f32 %v2075, %v2302
    %v2304 = vpop.f32.mrb[0].mxu0
    %v2305 = vpop.f32.mrb[0].mxu0
    %v2306 = vadd.f32 %v2075, %v2305
    %v2307 = vpop.f32.mrb[0].mxu0
    %2308 = vmatprep.mubr.bf16.mxu0 %v2005
    %2309 = vmatmul.mubr.bf16.gmra.mrb[0].mxu0 %v2004
    %v2310 = vpop.f32.mrb[0].mxu0
    %v2311 = vadd.f32 %v2075, %v2310
    %v2312 = vpop.f32.mrb[0].mxu0
    %v2313 = vpop.f32.mrb[0].mxu0
    %v2314 = vadd.f32 %v2075, %v2313
    %v2315 = vpop.f32.mrb[0].mxu0
    %2316 = vdwg.mxu0
    %2317 = vmatprep.subr.bf16.mxu0 0
    %2318 = vmatpush1.bf16.msra.mxu0 %v2220
    %2319 = vmatprep.subr.bf16.mxu0 0
    %2320 = vmatpush1.bf16.msra.mxu0 %v2221
    %2321 = vmatprep.subr.bf16.mxu0 0
    %2322 = vmatpush1.bf16.msra.mxu0 %v2222
    %2323 = vmatprep.subr.bf16.mxu0 0
    %2324 = vmatpush1.bf16.msra.mxu0 %v2223
    %2325 = vmatprep.subr.bf16.mxu0 0
    %2326 = vmatpush1.bf16.msra.mxu0 %v2224
    %2327 = vmatprep.subr.bf16.mxu0 0
    %2328 = vmatpush1.bf16.msra.mxu0 %v2225
    %2329 = vmatprep.subr.bf16.mxu0 0
    %2330 = vmatpush1.bf16.msra.mxu0 %v2226
    %2331 = vmatprep.subr.bf16.mxu0 0
    %2332 = vmatpush1.bf16.msra.mxu0 %v2227
    %2333 = vmatprep.subr.bf16.mxu0 0
    %2334 = vmatpush1.bf16.msra.mxu0 %v2228
    %2335 = vmatprep.subr.bf16.mxu0 0
    %2336 = vmatpush1.bf16.msra.mxu0 %v2229
    %2337 = vmatprep.subr.bf16.mxu0 0
    %2338 = vmatpush1.bf16.msra.mxu0 %v2230
    %2339 = vmatprep.subr.bf16.mxu0 0
    %2340 = vmatpush1.bf16.msra.mxu0 %v2231
    %2341 = vmatprep.subr.bf16.mxu0 0
    %2342 = vmatpush1.bf16.msra.mxu0 %v2232
    %2343 = vmatprep.subr.bf16.mxu0 0
    %2344 = vmatpush1.bf16.msra.mxu0 %v2233
    %2345 = vmatprep.subr.bf16.mxu0 0
    %2346 = vmatpush1.bf16.msra.mxu0 %v2234
    %2347 = vmatprep.subr.bf16.mxu0 0
    %2348 = vmatpush1.bf16.msra.mxu0 %v2235
    %2349 = vmatprep.mubr.bf16.mxu0 %v2003
    %2350 = vmatmul.mubr.bf16.gmra.mrb[0].mxu0 %v2002
    %v2351 = vpop.f32.mrb[0].mxu0
    %v2352 = vadd.f32 %v2303, %v2351
    %v2353 = vpop.f32.mrb[0].mxu0
    %v2354 = vpop.f32.mrb[0].mxu0
    %v2355 = vadd.f32 %v2306, %v2354
    %v2356 = vpop.f32.mrb[0].mxu0
    %2357 = vmatprep.mubr.bf16.mxu0 %v2007
    %2358 = vmatmul.mubr.bf16.gmra.mrb[0].mxu0 %v2006
    %v2359 = vpop.f32.mrb[0].mxu0
    %v2360 = vadd.f32 %v2311, %v2359
    %v2361 = vpop.f32.mrb[0].mxu0
    %v2362 = vpop.f32.mrb[0].mxu0
    %v2363 = vadd.f32 %v2314, %v2362
    %v2364 = vpop.f32.mrb[0].mxu0
    %2365 = vdwg.mxu0
    %v2366 = vadd.f32 %v1658, %v2352
    %v2367 = vadd.f32 %v1659, %v2355
    %v2368 = vadd.f32 %v1660, %v2360
    %v2369 = vadd.f32 %v1661, %v2363
    %2370 = vst [vmem:[#allocation11] sm:$0xff] %v2366
    %2371 = vst [vmem:[#allocation11 + $0x8] sm:$0xff] %v2367
    %2372 = vst [vmem:[#allocation11 + $0x10] sm:$0xff] %v2368
    %2373 = vst [vmem:[#allocation11 + $0x18] sm:$0xff] %v2369
    // Predicated region
    $region50: #{tpu_custom_call.1} parent=1 // pred_check
      _
    $region51: #{tpu_custom_call.1} parent=1 // pred_check_branch
      %2375 = sbr.rel (0) target = $region53
    $region52: #{tpu_custom_call.1} parent=1 // pred_region
      %s2377 = ssub.s32 512, 512
      %2378 = vsyncadd [#allocation4], %s2377
      %s2379 = sshll.u32 [#allocation11], 4
      %s2380 = int_to_ptr.vmem [resolvable:$true] %s2379
      %2385 = dma.vmem_to_hbm [thread:$0]  %s2380, 512, %s7, [#allocation4], 128, 128, 8
    $region53: #{tpu_custom_call.1} parent=1 // pred_fallthru
      _
    // Predicated region
    $region54: #{tpu_custom_call.1} parent=1 // pred_check
      _
    $region55: #{tpu_custom_call.1} parent=1 // pred_check_branch
      %2387 = sbr.rel (0) target = $region57
    $region56: #{tpu_custom_call.1} parent=1 // pred_region
      %2388 = dma.done [#allocation4], 512
    $region57: #{tpu_custom_call.1} parent=1 // pred_fallthru
      _
    %2389 = vsyncpa [#allocation3], 1
    %2390 = vsyncpa [#allocation6], 1
    %2391 = vsyncpa [#allocation9], 1
    %2392 = vsyncpa [#allocation4], 1

</llo_original>
